<compile_context>
chip_gen: v7x
topology: tpu7x:2x2x1
jax: 0.10.0
libtpu: 0.0.40
codegen_flags: <defaults>
</compile_context>

<pallas_src>
import numpy as np
import jax
import jax.numpy as jnp
from jax.experimental import pallas as pl
from jax.experimental.pallas import tpu as pltpu


_LANE = 128
_VMEM_LIMIT = 48 * 1024 * 1024   # safe on v7x (64 MiB/TC); plenty for default tiles


def _round_up(n, m=_LANE):
    return ((n + m - 1) // m) * m


def _pick_tile(dim, target):
    """Largest multiple of 128 <= target that divides dim (dim is a 128-multiple)."""
    t = min(target, dim)
    while dim % t:
        t -= _LANE
    return t


def _plan_pad(dim, target, waste_cap=1.25):
    """Pad `dim` so a large tile (multiple of 128, <= target) divides it.

    Prefers the biggest tile whose padding waste stays under `waste_cap`,
    falling back to plain 128-padding (tile 128 always divides that)."""
    dim128 = _round_up(dim)
    t = min(_round_up(target), dim128)
    while t > _LANE:
        padded = _round_up(dim128, t)
        if padded <= dim128 * waste_cap:
            return padded
        t -= _LANE
    return dim128


# ----------------------------------------------------------------------------
# Kernel 1: one tiled abstract-affine bound-propagation step.
#   nl = relu(al) @ bl + min(al,0) @ bu
#   nu = relu(au) @ bu + min(au,0) @ bl
# al/au carry [coeffs | intercept | 0pad]; bl/bu are homogeneous-augmented
# previous-layer matrices, so intercept updates ride in the same matmuls.
# The f32 output tiles double as the K-axis accumulators (block index (i,j) is
# invariant over k => the tile stays VMEM-resident across the reduction).
# ----------------------------------------------------------------------------
def _backsubst_kernel(al_ref, au_ref, bl_ref, bu_ref, nl_ref, nu_ref):
    @pl.when(pl.program_id(2) == 0)
    def _():
        nl_ref[...] = jnp.zeros_like(nl_ref)
        nu_ref[...] = jnp.zeros_like(nu_ref)

    al = al_ref[...]
    au = au_ref[...]
    pos_l = jnp.maximum(al, 0.0)
    neg_l = al - pos_l                      # == min(al, 0), one VALU op cheaper
    pos_u = jnp.maximum(au, 0.0)
    neg_u = au - pos_u

    bl = bl_ref[...]
    bu = bu_ref[...]

    nl_ref[...] += jnp.dot(pos_l, bl, preferred_element_type=jnp.float32)
    nl_ref[...] += jnp.dot(neg_l, bu, preferred_element_type=jnp.float32)
    nu_ref[...] += jnp.dot(pos_u, bu, preferred_element_type=jnp.float32)
    nu_ref[...] += jnp.dot(neg_u, bl, preferred_element_type=jnp.float32)


def affine_bound_step(al, au, bl, bu, *, tm=512, tn=1024, tk=512):
    M, K = al.shape
    Kb, N = bl.shape
    assert K == Kb and au.shape == al.shape and bu.shape == bl.shape
    assert M % _LANE == 0 and K % _LANE == 0 and N % _LANE == 0, \
        "affine_bound_step expects pre-padded (multiple-of-128) operands"

    tm = _pick_tile(M, tm)
    tn = _pick_tile(N, tn)
    tk = _pick_tile(K, tk)
    # v7x megacore guard: keep >= 2 parallel (i,j) tiles when possible so both
    # TensorCores get work (near-free on single-TC v5e/v6e).
    if (M // tm) * (N // tn) < 2:
        if M > _LANE:
            tm = _pick_tile(M, tm - _LANE)
        elif N > _LANE:
            tn = _pick_tile(N, tn - _LANE)
    grid = (M // tm, N // tn, K // tk)

    cost = pl.CostEstimate(
        flops=4 * 2 * M * N * K,
        transcendentals=0,
        bytes_accessed=4 * ((N // tn) * 2 * M * K      # al/au re-fetched per j
                            + (M // tm) * 2 * K * N    # bl/bu re-fetched per i
                            + 2 * M * N),              # outputs written once
    )

    out_shape = (jax.ShapeDtypeStruct((M, N), jnp.float32),
                 jax.ShapeDtypeStruct((M, N), jnp.float32))

    return pl.pallas_call(
        _backsubst_kernel,
        grid=grid,
        in_specs=[
            pl.BlockSpec((tm, tk), lambda i, j, k: (i, k)),
            pl.BlockSpec((tm, tk), lambda i, j, k: (i, k)),
            pl.BlockSpec((tk, tn), lambda i, j, k: (k, j)),
            pl.BlockSpec((tk, tn), lambda i, j, k: (k, j)),
        ],
        out_specs=(
            pl.BlockSpec((tm, tn), lambda i, j, k: (i, j)),
            pl.BlockSpec((tm, tn), lambda i, j, k: (i, j)),
        ),
        out_shape=out_shape,
        compiler_params=pltpu.CompilerParams(
            dimension_semantics=("parallel", "parallel", "arbitrary"),
            vmem_limit_bytes=_VMEM_LIMIT),
        cost_estimate=cost,
    )(al, au, bl, bu)


# ----------------------------------------------------------------------------
# Kernel 2: last back-substitution step FUSED with input-box concretization.
# The finished (tm,tn) nl/nu tiles (accumulated in VMEM scratch over k) are
# immediately dotted with the lane-dense box columns cl/cu and accumulated into
# (tm,128) outputs whose block index (i,0) is invariant over j and k.
# ----------------------------------------------------------------------------
def _backsubst_concretize_kernel(al_ref, au_ref, bl_ref, bu_ref, cl_ref, cu_ref,
                                 low_ref, up_ref, accl_ref, accu_ref):
    j = pl.program_id(1)
    k = pl.program_id(2)

    @pl.when(k == 0)
    def _():
        accl_ref[...] = jnp.zeros_like(accl_ref)
        accu_ref[...] = jnp.zeros_like(accu_ref)

    @pl.when(jnp.logical_and(j == 0, k == 0))
    def _():
        low_ref[...] = jnp.zeros_like(low_ref)
        up_ref[...] = jnp.zeros_like(up_ref)

    al = al_ref[...]
    au = au_ref[...]
    pos_l = jnp.maximum(al, 0.0)
    neg_l = al - pos_l
    pos_u = jnp.maximum(au, 0.0)
    neg_u = au - pos_u

    bl = bl_ref[...]
    bu = bu_ref[...]

    accl_ref[...] += jnp.dot(pos_l, bl, preferred_element_type=jnp.float32)
    accl_ref[...] += jnp.dot(neg_l, bu, preferred_element_type=jnp.float32)
    accu_ref[...] += jnp.dot(pos_u, bu, preferred_element_type=jnp.float32)
    accu_ref[...] += jnp.dot(neg_u, bl, preferred_element_type=jnp.float32)

    @pl.when(k == pl.num_programs(2) - 1)
    def _():
        nl = accl_ref[...]
        nu = accu_ref[...]
        pnl = jnp.maximum(nl, 0.0)
        nnl = nl - pnl
        pnu = jnp.maximum(nu, 0.0)
        nnu = nu - pnu
        cl = cl_ref[...]
        cu = cu_ref[...]
        low_ref[...] += jnp.dot(pnl, cl, preferred_element_type=jnp.float32)
        low_ref[...] += jnp.dot(nnl, cu, preferred_element_type=jnp.float32)
        up_ref[...] += jnp.dot(pnu, cu, preferred_element_type=jnp.float32)
        up_ref[...] += jnp.dot(nnu, cl, preferred_element_type=jnp.float32)


def affine_bound_concretize_step(al, au, bl, bu, cl, cu, *, tm=512, tn=1024, tk=512):
    M, K = al.shape
    Kb, N = bl.shape
    Nc, C = cl.shape
    assert K == Kb and N == Nc and C == _LANE
    assert au.shape == al.shape and bu.shape == bl.shape and cu.shape == cl.shape
    assert M % _LANE == 0 and K % _LANE == 0 and N % _LANE == 0, \
        "affine_bound_concretize_step expects pre-padded operands"

    tm = _pick_tile(M, tm)
    tn = _pick_tile(N, tn)
    tk = _pick_tile(K, tk)
    # Only the i axis is "parallel" here (j is a reduction for low/up).
    if M // tm < 2 and M > _LANE:
        tm = _pick_tile(M, tm - _LANE)
    grid = (M // tm, N // tn, K // tk)

    cost = pl.CostEstimate(
        flops=4 * 2 * M * N * K + 4 * 2 * M * N * C,
        transcendentals=0,
        bytes_accessed=4 * ((N // tn) * 2 * M * K
                            + (M // tm) * 2 * K * N
                            + (M // tm) * 2 * N * C
                            + 2 * M * C),
    )

    out_shape = (jax.ShapeDtypeStruct((M, C), jnp.float32),
                 jax.ShapeDtypeStruct((M, C), jnp.float32))

    return pl.pallas_call(
        _backsubst_concretize_kernel,
        grid=grid,
        in_specs=[
            pl.BlockSpec((tm, tk), lambda i, j, k: (i, k)),
            pl.BlockSpec((tm, tk), lambda i, j, k: (i, k)),
            pl.BlockSpec((tk, tn), lambda i, j, k: (k, j)),
            pl.BlockSpec((tk, tn), lambda i, j, k: (k, j)),
            pl.BlockSpec((tn, C), lambda i, j, k: (j, 0)),
            pl.BlockSpec((tn, C), lambda i, j, k: (j, 0)),
        ],
        out_specs=(
            pl.BlockSpec((tm, C), lambda i, j, k: (i, 0)),
            pl.BlockSpec((tm, C), lambda i, j, k: (i, 0)),
        ),
        out_shape=out_shape,
        scratch_shapes=[pltpu.VMEM((tm, tn), jnp.float32),
                        pltpu.VMEM((tm, tn), jnp.float32)],
        compiler_params=pltpu.CompilerParams(
            dimension_semantics=("parallel", "arbitrary", "arbitrary"),
            vmem_limit_bytes=_VMEM_LIMIT),
        cost_estimate=cost,
    )(al, au, bl, bu, cl, cu)


# ----------------------------------------------------------------------------
# Host-side data prep (done once per layer, cached across forwards).
# ----------------------------------------------------------------------------
def _augment_prev_layer(pxl, pxu, pil, piu, *, pad_target):
    """Homogeneous augmentation + tile-friendly zero padding:
    B = [[W, b], [0, 1], 0pad]."""
    pxl = jnp.asarray(pxl, jnp.float32)
    pxu = jnp.asarray(pxu, jnp.float32)
    pil = jnp.asarray(pil, jnp.float32)
    piu = jnp.asarray(piu, jnp.float32)
    dk, dkm1 = pxl.shape
    pk = _plan_pad(dk + 1, pad_target)
    pkm1 = _plan_pad(dkm1 + 1, pad_target)

    def build(px, pi):
        b = jnp.zeros((pk, pkm1), jnp.float32)
        b = b.at[:dk, :dkm1].set(px)
        b = b.at[:dk, dkm1].set(pi[:, 0])
        b = b.at[dk, dkm1].set(1.0)       # homogeneous row carries the intercept through
        return b

    return build(pxl, pil), build(pxu, piu)


def _build_box_columns(p_rows, lowers0, uppers0, hom_idx):
    """Lane-dense concretization operands: column 0 holds [l0;...;1] / [u0;...;1]."""
    lowers0 = jnp.asarray(lowers0, jnp.float32)
    uppers0 = jnp.asarray(uppers0, jnp.float32)
    d0 = lowers0.shape[0]
    cl = jnp.zeros((p_rows, _LANE), jnp.float32)
    cu = jnp.zeros((p_rows, _LANE), jnp.float32)
    cl = cl.at[:d0, 0].set(lowers0[:, 0]).at[hom_idx, 0].set(1.0)
    cu = cu.at[:d0, 0].set(uppers0[:, 0]).at[hom_idx, 0].set(1.0)
    return cl, cu


# ----------------------------------------------------------------------------
# AbstractAffine forward (semantics of the PyTorch module)
# ----------------------------------------------------------------------------
class AbstractAffinePallas:
    def __init__(self, weights, biases, verbose=False, *,
                 tile_m=512, tile_n=1024, tile_k=512):
        self.weights = jnp.asarray(weights, jnp.float32)   # (D_in, D_out)
        self.biases = jnp.asarray(biases, jnp.float32)     # (D_out, 1)
        self.verbose = verbose
        self._tiles = (tile_m, tile_n, tile_k)
        self._b_cache = {}   # (ids of layer arrays) -> (arrays, bl, bu)

        # Hoisted out of forward(): transpose + padded homogeneous A0 = [W^T | b | 0].
        self._wt = self.weights.T                           # (D_out, D_in)
        d_out, d_cur = self._wt.shape
        m_pad = _plan_pad(d_out, tile_m)
        p_cur = _plan_pad(d_cur + 1, tile_k)
        a0 = jnp.zeros((m_pad, p_cur), jnp.float32)
        a0 = a0.at[:d_out, :d_cur].set(self._wt)
        a0 = a0.at[:d_out, d_cur].set(self.biases[:, 0])
        self._a0 = a0
        self._d_out = d_out
        self._d_cur = d_cur

    def get_output_size(self):
        return self.biases.shape[0]

    def _augmented(self, prev):
        # Cache keyed by array identity (jax arrays are immutable); a strong
        # reference to the key arrays is kept so ids cannot be recycled while cached.
        keys = (prev['x_lowers'], prev['x_uppers'],
                prev['x_lowers_intercepts'], prev['x_uppers_intercepts'])
        ck = tuple(id(k) for k in keys)
        hit = self._b_cache.get(ck)
        if hit is not None and all(a is b for a, b in zip(hit[0], keys)):
            return hit[1], hit[2]
        bl, bu = _augment_prev_layer(*keys, pad_target=self._tiles[2])
        self._b_cache[ck] = (keys, bl, bu)
        return bl, bu

    def forward(self, network, layer_idx, max_backsubst=30):
        if self.verbose:
            print('\tAffine unit - performing forward pass (Pallas)')

        x_lowers = self._wt
        x_uppers = self._wt
        x_lowers_intercepts = self.biases
        x_uppers_intercepts = self.biases

        tm, tn, tk = self._tiles
        n_steps = min(max_backsubst, layer_idx)
        l0 = jnp.asarray(network[0]['lowers'], jnp.float32)
        u0 = jnp.asarray(network[0]['uppers'], jnp.float32)

        al = au = self._a0

        if n_steps == 0:
            # No back-substitution: concretize A0 directly against the box.
            cl, cu = _build_box_columns(al.shape[1], l0, u0, self._d_cur)
            lowp, upp = affine_bound_step(al, au, cl, cu, tm=tm, tn=_LANE, tk=tk)
        else:
            # NOTE: the loop first substitutes through network[layer_idx] itself,
            # exactly as the PyTorch reference does.
            for i in range(n_steps - 1):
                prev = network[layer_idx - i]
                bl, bu = self._augmented(prev)
                al, au = affine_bound_step(al, au, bl, bu, tm=tm, tn=tn, tk=tk)
            # Last step fused with the input-box concretization (no HBM round
            # trip of the final (M,N) coefficient matrices).
            prev = network[layer_idx - (n_steps - 1)]
            bl, bu = self._augmented(prev)
            hom_idx = prev['x_lowers'].shape[1]   # intercept column after this step
            cl, cu = _build_box_columns(bl.shape[1], l0, u0, hom_idx)
            lowp, upp = affine_bound_concretize_step(
                al, au, bl, bu, cl, cu, tm=tm, tn=tn, tk=tk)

        d_out = self._d_out
        lowers = lowp[:d_out, 0:1]
        uppers = upp[:d_out, 0:1]

        return {'lowers': lowers, 'uppers': uppers,
                'x_lowers': x_lowers, 'x_uppers': x_uppers,
                'x_lowers_intercepts': x_lowers_intercepts,
                'x_uppers_intercepts': x_uppers_intercepts}


# ----------------------------------------------------------------------------
# Pure-numpy reference (mirrors the torch code) for validation.
# ----------------------------------------------------------------------------
def reference_forward(network, weights, biases, layer_idx, max_backsubst=30):
    xl = np.asarray(weights, np.float64).T.copy()
    xu = xl.copy()
    il = np.asarray(biases, np.float64).copy()
    iu = il.copy()
    for i in range(min(max_backsubst, layer_idx)):
        prev = network[layer_idx - i]
        pxl = np.asarray(prev['x_lowers'], np.float64)
        pxu = np.asarray(prev['x_uppers'], np.float64)
        pil = np.asarray(prev['x_lowers_intercepts'], np.float64)
        piu = np.asarray(prev['x_uppers_intercepts'], np.float64)
        il = il + np.maximum(xl, 0) @ pil + np.minimum(xl, 0) @ piu
        iu = iu + np.maximum(xu, 0) @ piu + np.minimum(xu, 0) @ pil
        xl_new = np.maximum(xl, 0) @ pxl + np.minimum(xl, 0) @ pxu
        xu_new = np.maximum(xu, 0) @ pxu + np.minimum(xu, 0) @ pxl
        xl, xu = xl_new, xu_new
    l0 = np.asarray(network[0]['lowers'], np.float64)
    u0 = np.asarray(network[0]['uppers'], np.float64)
    lowers = np.sum(np.maximum(xl, 0) * l0.T + np.minimum(xl, 0) * u0.T,
                    axis=1, keepdims=True) + il
    uppers = np.sum(np.maximum(xu, 0) * u0.T + np.minimum(xu, 0) * l0.T,
                    axis=1, keepdims=True) + iu
    return lowers, uppers


# ----------------------------------------------------------------------------
def _make_layer(kw_l, kw_u, kb_l, kb_u, d_out, d_in):
    return {
        'x_lowers': jax.random.normal(kw_l, (d_out, d_in), jnp.float32) * 0.5,
        'x_uppers': jax.random.normal(kw_u, (d_out, d_in), jnp.float32) * 0.5,
        'x_lowers_intercepts': jax.random.normal(kb_l, (d_out, 1), jnp.float32),
        'x_uppers_intercepts': jax.random.normal(kb_u, (d_out, 1), jnp.float32),
    }


def _run_case(seed, d0, d1, d2, d_out, tiles, rtol, atol):
    key = jax.random.PRNGKey(seed)
    keys = jax.random.split(key, 12)

    center = jax.random.normal(keys[0], (d0, 1), jnp.float32)
    radius = jnp.abs(jax.random.normal(keys[1], (d0, 1), jnp.float32))
    layer0 = {'lowers': center - radius, 'uppers': center + radius}
    layer1 = _make_layer(keys[2], keys[3], keys[4], keys[5], d1, d0)
    layer2 = _make_layer(keys[6], keys[7], keys[8], keys[9], d2, d1)
    network = {0: layer0, 1: layer1, 2: layer2}

    weights = jax.random.normal(keys[10], (d2, d_out), jnp.float32) * 0.3
    biases = jax.random.normal(keys[11], (d_out, 1), jnp.float32)

    module = AbstractAffinePallas(weights, biases,
                                  tile_m=tiles[0], tile_n=tiles[1], tile_k=tiles[2])
    out_layer = module.forward(network, layer_idx=2, max_backsubst=30)
    jax.block_until_ready(out_layer['lowers'])
    jax.block_until_ready(out_layer['uppers'])

    np_net = {k: {kk: np.asarray(vv) for kk, vv in v.items()}
              for k, v in network.items()}
    ref_low, ref_up = reference_forward(np_net, np.asarray(weights),
                                        np.asarray(biases), 2, max_backsubst=30)

    np.testing.assert_allclose(np.asarray(out_layer['lowers']), ref_low,
                               rtol=rtol, atol=atol)
    np.testing.assert_allclose(np.asarray(out_layer['uppers']), ref_up,
                               rtol=rtol, atol=atol)
    assert out_layer['lowers'].shape == (d_out, 1)
    assert out_layer['uppers'].shape == (d_out, 1)
    assert out_layer['x_lowers'].shape == (d_out, d2)
    assert out_layer['x_lowers_intercepts'].shape == (d_out, 1)


if __name__ == "__main__":
    # Case 1: original small shapes (single-tile grid after 128-padding), default tiles.
    _run_case(seed=0, d0=8, d1=16, d2=16, d_out=12,
              tiles=(512, 1024, 512), rtol=1e-4, atol=1e-4)

    # Case 2: medium shapes with small tiles to exercise the multi-tile
    # (parallel, parallel, arbitrary) grid, K-axis accumulation, and multi-j
    # accumulation in the fused concretization kernel.
    _run_case(seed=1, d0=136, d1=320, d2=272, d_out=150,
              tiles=(128, 128, 128), rtol=2e-3, atol=1e-2)

    # Case 3: dims that trigger the waste-capped pad-to-tile path (640-wide
    # homogeneous dim -> padded 768, tile 384) plus the megacore row split.
    _run_case(seed=2, d0=200, d1=639, d2=260, d_out=130,
              tiles=(512, 1024, 512), rtol=2e-3, atol=1e-1)

    print("KERNEL_OK")
</pallas_src>

<mosaic_0001>
module attributes {stable_mosaic.version = 11 : i64} {
  func.func @_backsubst_kernel(%arg0: i32, %arg1: i32, %arg2: i32, %arg3: memref<128x128xf32, #tpu.memory_space<vmem>>, %arg4: memref<128x128xf32, #tpu.memory_space<vmem>>, %arg5: memref<128x128xf32, #tpu.memory_space<vmem>>, %arg6: memref<128x128xf32, #tpu.memory_space<vmem>>, %arg7: memref<128x128xf32, #tpu.memory_space<vmem>>, %arg8: memref<128x128xf32, #tpu.memory_space<vmem>>) attributes {dimension_semantics = [#tpu.dimension_semantics<parallel>, #tpu.dimension_semantics<parallel>, #tpu.dimension_semantics<arbitrary>], iteration_bounds = array<i64: 1, 1, 1>, scalar_prefetch = 0 : i64, scratch_operands = 0 : i64, tpu.core_type = #tpu.core_type<tc>, window_params = [{transform_indices = @transform_0, window_bounds = array<i64: 128, 128>}, {transform_indices = @transform_1, window_bounds = array<i64: 128, 128>}, {transform_indices = @transform_2, window_bounds = array<i64: 128, 128>}, {transform_indices = @transform_3, window_bounds = array<i64: 128, 128>}, {transform_indices = @transform_4, window_bounds = array<i64: 128, 128>}, {transform_indices = @transform_5, window_bounds = array<i64: 128, 128>}]} {
    %c0_i32 = arith.constant 0 : i32
    %0 = arith.cmpi eq, %arg2, %c0_i32 : i32
    %1 = arith.extui %0 : i1 to i32
    %c0_i32_0 = arith.constant 0 : i32
    %2 = arith.cmpi ne, %1, %c0_i32_0 : i32
    scf.if %2 {
      %cst_29 = arith.constant 0.000000e+00 : f32
      %29 = vector.broadcast %cst_29 : f32 to vector<128x128xf32>
      %c0_30 = arith.constant 0 : index
      %c0_31 = arith.constant 0 : index
      %30 = vector.load %arg7[%c0_30, %c0_31] : memref<128x128xf32, #tpu.memory_space<vmem>>, vector<128x128xf32>
      tpu.vector_store %arg7[%c0_30, %c0_31], %29 {strides = array<i32>} : memref<128x128xf32, #tpu.memory_space<vmem>>, vector<128x128xf32>,
      %cst_32 = arith.constant 0.000000e+00 : f32
      %31 = vector.broadcast %cst_32 : f32 to vector<128x128xf32>
      %c0_33 = arith.constant 0 : index
      %c0_34 = arith.constant 0 : index
      %32 = vector.load %arg8[%c0_33, %c0_34] : memref<128x128xf32, #tpu.memory_space<vmem>>, vector<128x128xf32>
      tpu.vector_store %arg8[%c0_33, %c0_34], %31 {strides = array<i32>} : memref<128x128xf32, #tpu.memory_space<vmem>>, vector<128x128xf32>,
    } else {
    }
    %c0 = arith.constant 0 : index
    %c0_1 = arith.constant 0 : index
    %3 = vector.load %arg3[%c0, %c0_1] : memref<128x128xf32, #tpu.memory_space<vmem>>, vector<128x128xf32>
    %c0_2 = arith.constant 0 : index
    %c0_3 = arith.constant 0 : index
    %4 = vector.load %arg4[%c0_2, %c0_3] : memref<128x128xf32, #tpu.memory_space<vmem>>, vector<128x128xf32>
    %cst = arith.constant 0.000000e+00 : f32
    %5 = vector.broadcast %cst : f32 to vector<128x128xf32>
    %6 = arith.maximumf %3, %5 : vector<128x128xf32>
    %7 = arith.subf %3, %6 : vector<128x128xf32>
    %cst_4 = arith.constant 0.000000e+00 : f32
    %8 = vector.broadcast %cst_4 : f32 to vector<128x128xf32>
    %9 = arith.maximumf %4, %8 : vector<128x128xf32>
    %10 = arith.subf %4, %9 : vector<128x128xf32>
    %c0_5 = arith.constant 0 : index
    %c0_6 = arith.constant 0 : index
    %11 = vector.load %arg5[%c0_5, %c0_6] : memref<128x128xf32, #tpu.memory_space<vmem>>, vector<128x128xf32>
    %c0_7 = arith.constant 0 : index
    %c0_8 = arith.constant 0 : index
    %12 = vector.load %arg6[%c0_7, %c0_8] : memref<128x128xf32, #tpu.memory_space<vmem>>, vector<128x128xf32>
    %c0_9 = arith.constant 0 : index
    %c0_10 = arith.constant 0 : index
    %13 = vector.load %arg7[%c0_9, %c0_10] : memref<128x128xf32, #tpu.memory_space<vmem>>, vector<128x128xf32>
    %cst_11 = arith.constant dense<0.000000e+00> : vector<128x128xf32>
    %14 = tpu.matmul %6, %11, %cst_11 {dimension_numbers = #tpu.dot_dimension_numbers<[1], [0], [0], [1], [0, 0, 1, 1], [], []>} : vector<128x128xf32>, vector<128x128xf32>, vector<128x128xf32> -> vector<128x128xf32>
    %15 = arith.addf %13, %14 : vector<128x128xf32>
    %c0_12 = arith.constant 0 : index
    %c0_13 = arith.constant 0 : index
    %16 = vector.load %arg7[%c0_12, %c0_13] : memref<128x128xf32, #tpu.memory_space<vmem>>, vector<128x128xf32>
    tpu.vector_store %arg7[%c0_12, %c0_13], %15 {strides = array<i32>} : memref<128x128xf32, #tpu.memory_space<vmem>>, vector<128x128xf32>,
    %c0_14 = arith.constant 0 : index
    %c0_15 = arith.constant 0 : index
    %17 = vector.load %arg7[%c0_14, %c0_15] : memref<128x128xf32, #tpu.memory_space<vmem>>, vector<128x128xf32>
    %cst_16 = arith.constant dense<0.000000e+00> : vector<128x128xf32>
    %18 = tpu.matmul %7, %12, %cst_16 {dimension_numbers = #tpu.dot_dimension_numbers<[1], [0], [0], [1], [0, 0, 1, 1], [], []>} : vector<128x128xf32>, vector<128x128xf32>, vector<128x128xf32> -> vector<128x128xf32>
    %19 = arith.addf %17, %18 : vector<128x128xf32>
    %c0_17 = arith.constant 0 : index
    %c0_18 = arith.constant 0 : index
    %20 = vector.load %arg7[%c0_17, %c0_18] : memref<128x128xf32, #tpu.memory_space<vmem>>, vector<128x128xf32>
    tpu.vector_store %arg7[%c0_17, %c0_18], %19 {strides = array<i32>} : memref<128x128xf32, #tpu.memory_space<vmem>>, vector<128x128xf32>,
    %c0_19 = arith.constant 0 : index
    %c0_20 = arith.constant 0 : index
    %21 = vector.load %arg8[%c0_19, %c0_20] : memref<128x128xf32, #tpu.memory_space<vmem>>, vector<128x128xf32>
    %cst_21 = arith.constant dense<0.000000e+00> : vector<128x128xf32>
    %22 = tpu.matmul %9, %12, %cst_21 {dimension_numbers = #tpu.dot_dimension_numbers<[1], [0], [0], [1], [0, 0, 1, 1], [], []>} : vector<128x128xf32>, vector<128x128xf32>, vector<128x128xf32> -> vector<128x128xf32>
    %23 = arith.addf %21, %22 : vector<128x128xf32>
    %c0_22 = arith.constant 0 : index
    %c0_23 = arith.constant 0 : index
    %24 = vector.load %arg8[%c0_22, %c0_23] : memref<128x128xf32, #tpu.memory_space<vmem>>, vector<128x128xf32>
    tpu.vector_store %arg8[%c0_22, %c0_23], %23 {strides = array<i32>} : memref<128x128xf32, #tpu.memory_space<vmem>>, vector<128x128xf32>,
    %c0_24 = arith.constant 0 : index
    %c0_25 = arith.constant 0 : index
    %25 = vector.load %arg8[%c0_24, %c0_25] : memref<128x128xf32, #tpu.memory_space<vmem>>, vector<128x128xf32>
    %cst_26 = arith.constant dense<0.000000e+00> : vector<128x128xf32>
    %26 = tpu.matmul %10, %11, %cst_26 {dimension_numbers = #tpu.dot_dimension_numbers<[1], [0], [0], [1], [0, 0, 1, 1], [], []>} : vector<128x128xf32>, vector<128x128xf32>, vector<128x128xf32> -> vector<128x128xf32>
    %27 = arith.addf %25, %26 : vector<128x128xf32>
    %c0_27 = arith.constant 0 : index
    %c0_28 = arith.constant 0 : index
    %28 = vector.load %arg8[%c0_27, %c0_28] : memref<128x128xf32, #tpu.memory_space<vmem>>, vector<128x128xf32>
    tpu.vector_store %arg8[%c0_27, %c0_28], %27 {strides = array<i32>} : memref<128x128xf32, #tpu.memory_space<vmem>>, vector<128x128xf32>,
    return
  }
  func.func @transform_0(%arg0: i32, %arg1: i32, %arg2: i32) -> (i32, i32) {
    %c0_i32 = arith.constant 0 : i32
    return %arg0, %arg2 : i32, i32
  }
  func.func @transform_1(%arg0: i32, %arg1: i32, %arg2: i32) -> (i32, i32) {
    %c0_i32 = arith.constant 0 : i32
    return %arg0, %arg2 : i32, i32
  }
  func.func @transform_2(%arg0: i32, %arg1: i32, %arg2: i32) -> (i32, i32) {
    %c0_i32 = arith.constant 0 : i32
    return %arg2, %arg1 : i32, i32
  }
  func.func @transform_3(%arg0: i32, %arg1: i32, %arg2: i32) -> (i32, i32) {
    %c0_i32 = arith.constant 0 : i32
    return %arg2, %arg1 : i32, i32
  }
  func.func @transform_4(%arg0: i32, %arg1: i32, %arg2: i32) -> (i32, i32) {
    %c0_i32 = arith.constant 0 : i32
    return %arg0, %arg1 : i32, i32
  }
  func.func @transform_5(%arg0: i32, %arg1: i32, %arg2: i32) -> (i32, i32) {
    %c0_i32 = arith.constant 0 : i32
    return %arg0, %arg1 : i32, i32
  }
}

</mosaic_0001>

<llo_original>
// kernel: tpu_custom_call.1
$region0: #{tpu_custom_call.1}
  #allocation0 [shape = 'u32[]', space=smem, size = 0x4, offset = 0x4, fixed_abs, tag = 'smem constant byte address 0x4 - core index']
  #allocation1 [shape = 'u32[144,128]{1,0:T(1,128)}', space=vmem, size = 0x12000, scoped, tag = 'internal scratch']
  %s0 = inlined_call_operand.hbm [shape: f32[128,128], index: 0, kind: input, shape index: {}]
  %s1 = inlined_call_operand.hbm [shape: f32[128,128], index: 1, kind: input, shape index: {}]
  %s2 = inlined_call_operand.hbm [shape: f32[128,128], index: 2, kind: input, shape index: {}]
  %s3 = inlined_call_operand.hbm [shape: f32[128,128], index: 3, kind: input, shape index: {}]
  %s4 = inlined_call_operand.hbm [shape: f32[128,128], index: 4, kind: output, shape index: {0}]
  %s5 = inlined_call_operand.hbm [shape: f32[128,128], index: 5, kind: output, shape index: {1}]
  %6 = xla_tuple %s4, %s5
  %s7 = sld [smem:[#allocation0]]
  $region54: #{tpu_custom_call.1} parent=0
    _
  %s9 = ssub.s32 1, %s7
  %s10 = scalar_select 0, %s9, %s7
  $region1: #{tpu_custom_call.1} parent=0
    #allocation2 [shape = 'u8[65536]{0}', space=vmem, size = 0x10000, scoped, tag = 'input window, operand 0, single buffered']
    #allocation3 [shape = 's32[1]{0}', space=sflag, size = 0x4, scoped, tag = 'scoped memory for tpu_custom_call.1']
    #allocation4 [shape = 's32[1]{0}', space=sflag, size = 0x4, scoped, tag = 'scoped memory for tpu_custom_call.1']
    #allocation5 [shape = 'u8[65536]{0}', space=vmem, size = 0x10000, scoped, tag = 'input window, operand 1, single buffered']
    #allocation6 [shape = 's32[1]{0}', space=sflag, size = 0x4, scoped, tag = 'scoped memory for tpu_custom_call.1']
    #allocation7 [shape = 'u8[65536]{0}', space=vmem, size = 0x10000, scoped, tag = 'input window, operand 2, single buffered']
    #allocation8 [shape = 'u8[65536]{0}', space=vmem, size = 0x10000, scoped, tag = 'input window, operand 3, single buffered']
    #allocation9 [shape = 's32[1]{0}', space=sflag, size = 0x4, scoped, tag = 'scoped memory for tpu_custom_call.1']
    #allocation10 [shape = 'u8[65536]{0}', space=vmem, size = 0x10000, scoped, tag = 'output window, operand 0, single buffered']
    #allocation11 [shape = 'u8[65536]{0}', space=vmem, size = 0x10000, scoped, tag = 'output window, operand 1, single buffered']
    #allocation12 [shape = 's32[1]{0}', space=sflag, size = 0x4, scoped, tag = 'scoped memory for tpu_custom_call.1']
    %11 = vsyncpa [#allocation3], 0
    %12 = vsyncpa [#allocation6], 0
    %13 = vsyncpa [#allocation9], 0
    %14 = vsyncpa [#allocation4], 0
    %15 = vsyncpa [#allocation12], 0
    // Predicated region
    $region2: #{tpu_custom_call.1} parent=1 // pred_check
      _
    $region3: #{tpu_custom_call.1} parent=1 // pred_check_branch
      %17 = sbr.rel (0) target = $region5
    $region4: #{tpu_custom_call.1} parent=1 // pred_region
      %s19 = ssub.s32 2048, 2048
      %20 = vsyncadd [#allocation3], %s19
      %s21 = sshll.u32 [#allocation2], 4
      %s22 = int_to_ptr.vmem [resolvable:$true] %s21
      %27 = dma.hbm_to_vmem [thread:$0]  %s0, 2048, %s22, [#allocation3], 128, 128, 8
    $region5: #{tpu_custom_call.1} parent=1 // pred_fallthru
      _
    // Predicated region
    $region6: #{tpu_custom_call.1} parent=1 // pred_check
      _
    $region7: #{tpu_custom_call.1} parent=1 // pred_check_branch
      %29 = sbr.rel (0) target = $region9
    $region8: #{tpu_custom_call.1} parent=1 // pred_region
      %s31 = ssub.s32 2048, 2048
      %32 = vsyncadd [#allocation6], %s31
      %s33 = sshll.u32 [#allocation5], 4
      %s34 = int_to_ptr.vmem [resolvable:$true] %s33
      %39 = dma.hbm_to_vmem [thread:$0]  %s1, 2048, %s34, [#allocation6], 128, 128, 8
    $region9: #{tpu_custom_call.1} parent=1 // pred_fallthru
      _
    // Predicated region
    $region10: #{tpu_custom_call.1} parent=1 // pred_check
      _
    $region11: #{tpu_custom_call.1} parent=1 // pred_check_branch
      %41 = sbr.rel (0) target = $region13
    $region12: #{tpu_custom_call.1} parent=1 // pred_region
      %s43 = ssub.s32 2048, 2048
      %44 = vsyncadd [#allocation6], %s43
      %s45 = sshll.u32 [#allocation7], 4
      %s46 = int_to_ptr.vmem [resolvable:$true] %s45
      %51 = dma.hbm_to_vmem [thread:$0]  %s2, 2048, %s46, [#allocation6], 128, 128, 8
    $region13: #{tpu_custom_call.1} parent=1 // pred_fallthru
      _
    // Predicated region
    $region14: #{tpu_custom_call.1} parent=1 // pred_check
      _
    $region15: #{tpu_custom_call.1} parent=1 // pred_check_branch
      %53 = sbr.rel (0) target = $region17
    $region16: #{tpu_custom_call.1} parent=1 // pred_region
      %s55 = ssub.s32 2048, 2048
      %56 = vsyncadd [#allocation9], %s55
      %s57 = sshll.u32 [#allocation8], 4
      %s58 = int_to_ptr.vmem [resolvable:$true] %s57
      %63 = dma.hbm_to_vmem [thread:$0]  %s3, 2048, %s58, [#allocation9], 128, 128, 8
    $region17: #{tpu_custom_call.1} parent=1 // pred_fallthru
      _
    // Predicated region
    $region18: #{tpu_custom_call.1} parent=1 // pred_check
      _
    $region19: #{tpu_custom_call.1} parent=1 // pred_check_branch
      %65 = sbr.rel (0) target = $region21
    $region20: #{tpu_custom_call.1} parent=1 // pred_region
      %66 = dma.done [#allocation3], 2048
    $region21: #{tpu_custom_call.1} parent=1 // pred_fallthru
      _
    // Predicated region
    $region22: #{tpu_custom_call.1} parent=1 // pred_check
      _
    $region23: #{tpu_custom_call.1} parent=1 // pred_check_branch
      %68 = sbr.rel (0) target = $region25
    $region24: #{tpu_custom_call.1} parent=1 // pred_region
      %69 = dma.done [#allocation6], 2048
    $region25: #{tpu_custom_call.1} parent=1 // pred_fallthru
      _
    // Predicated region
    $region26: #{tpu_custom_call.1} parent=1 // pred_check
      _
    $region27: #{tpu_custom_call.1} parent=1 // pred_check_branch
      %71 = sbr.rel (0) target = $region29
    $region28: #{tpu_custom_call.1} parent=1 // pred_region
      %72 = dma.done [#allocation6], 2048
    $region29: #{tpu_custom_call.1} parent=1 // pred_fallthru
      _
    // Predicated region
    $region30: #{tpu_custom_call.1} parent=1 // pred_check
      _
    $region31: #{tpu_custom_call.1} parent=1 // pred_check_branch
      %74 = sbr.rel (0) target = $region33
    $region32: #{tpu_custom_call.1} parent=1 // pred_region
      %75 = dma.done [#allocation9], 2048
    $region33: #{tpu_custom_call.1} parent=1 // pred_fallthru
      _
    %p76 = scmp.eq.s32.totalorder 0, 0
    // Predicated region
    $region34: #{tpu_custom_call.1} parent=1 // pred_check
      %p77 = pneg %p76
    $region35: #{tpu_custom_call.1} parent=1 // pred_check_branch
      %79 = sbr.rel (%p77) target = $region37
    $region36: #{tpu_custom_call.1} parent=1 // pred_region
      %80 = vst [vmem:[#allocation10] sm:$0xff] 0.0
      %81 = vst [vmem:[#allocation10 + $0x8] sm:$0xff] 0.0
      %82 = vst [vmem:[#allocation10 + $0x10] sm:$0xff] 0.0
      %83 = vst [vmem:[#allocation10 + $0x18] sm:$0xff] 0.0
      %84 = vst [vmem:[#allocation10 + $0x20] sm:$0xff] 0.0
      %85 = vst [vmem:[#allocation10 + $0x28] sm:$0xff] 0.0
      %86 = vst [vmem:[#allocation10 + $0x30] sm:$0xff] 0.0
      %87 = vst [vmem:[#allocation10 + $0x38] sm:$0xff] 0.0
      %88 = vst [vmem:[#allocation10 + $0x40] sm:$0xff] 0.0
      %89 = vst [vmem:[#allocation10 + $0x48] sm:$0xff] 0.0
      %90 = vst [vmem:[#allocation10 + $0x50] sm:$0xff] 0.0
      %91 = vst [vmem:[#allocation10 + $0x58] sm:$0xff] 0.0
      %92 = vst [vmem:[#allocation10 + $0x60] sm:$0xff] 0.0
      %93 = vst [vmem:[#allocation10 + $0x68] sm:$0xff] 0.0
      %94 = vst [vmem:[#allocation10 + $0x70] sm:$0xff] 0.0
      %95 = vst [vmem:[#allocation10 + $0x78] sm:$0xff] 0.0
      %96 = vst [vmem:[#allocation11] sm:$0xff] 0.0
      %97 = vst [vmem:[#allocation11 + $0x8] sm:$0xff] 0.0
      %98 = vst [vmem:[#allocation11 + $0x10] sm:$0xff] 0.0
      %99 = vst [vmem:[#allocation11 + $0x18] sm:$0xff] 0.0
      %100 = vst [vmem:[#allocation11 + $0x20] sm:$0xff] 0.0
      %101 = vst [vmem:[#allocation11 + $0x28] sm:$0xff] 0.0
      %102 = vst [vmem:[#allocation11 + $0x30] sm:$0xff] 0.0
      %103 = vst [vmem:[#allocation11 + $0x38] sm:$0xff] 0.0
      %104 = vst [vmem:[#allocation11 + $0x40] sm:$0xff] 0.0
      %105 = vst [vmem:[#allocation11 + $0x48] sm:$0xff] 0.0
      %106 = vst [vmem:[#allocation11 + $0x50] sm:$0xff] 0.0
      %107 = vst [vmem:[#allocation11 + $0x58] sm:$0xff] 0.0
      %108 = vst [vmem:[#allocation11 + $0x60] sm:$0xff] 0.0
      %109 = vst [vmem:[#allocation11 + $0x68] sm:$0xff] 0.0
      %110 = vst [vmem:[#allocation11 + $0x70] sm:$0xff] 0.0
      %111 = vst [vmem:[#allocation11 + $0x78] sm:$0xff] 0.0
    $region37: #{tpu_custom_call.1} parent=1 // pred_fallthru
      _
    %v112 = vld [vmem:[#allocation2] sm:$0xff]
    %v113 = vld [vmem:[#allocation2 + $0x8] sm:$0xff]
    %v114 = vld [vmem:[#allocation2 + $0x10] sm:$0xff]
    %v115 = vld [vmem:[#allocation2 + $0x18] sm:$0xff]
    %v116 = vld [vmem:[#allocation2 + $0x20] sm:$0xff]
    %v117 = vld [vmem:[#allocation2 + $0x28] sm:$0xff]
    %v118 = vld [vmem:[#allocation2 + $0x30] sm:$0xff]
    %v119 = vld [vmem:[#allocation2 + $0x38] sm:$0xff]
    %v120 = vld [vmem:[#allocation2 + $0x40] sm:$0xff]
    %v121 = vld [vmem:[#allocation2 + $0x48] sm:$0xff]
    %v122 = vld [vmem:[#allocation2 + $0x50] sm:$0xff]
    %v123 = vld [vmem:[#allocation2 + $0x58] sm:$0xff]
    %v124 = vld [vmem:[#allocation2 + $0x60] sm:$0xff]
    %v125 = vld [vmem:[#allocation2 + $0x68] sm:$0xff]
    %v126 = vld [vmem:[#allocation2 + $0x70] sm:$0xff]
    %v127 = vld [vmem:[#allocation2 + $0x78] sm:$0xff]
    %v128 = vld [vmem:[#allocation5] sm:$0xff]
    %v129 = vld [vmem:[#allocation5 + $0x8] sm:$0xff]
    %v130 = vld [vmem:[#allocation5 + $0x10] sm:$0xff]
    %v131 = vld [vmem:[#allocation5 + $0x18] sm:$0xff]
    %v132 = vld [vmem:[#allocation5 + $0x20] sm:$0xff]
    %v133 = vld [vmem:[#allocation5 + $0x28] sm:$0xff]
    %v134 = vld [vmem:[#allocation5 + $0x30] sm:$0xff]
    %v135 = vld [vmem:[#allocation5 + $0x38] sm:$0xff]
    %v136 = vld [vmem:[#allocation5 + $0x40] sm:$0xff]
    %v137 = vld [vmem:[#allocation5 + $0x48] sm:$0xff]
    %v138 = vld [vmem:[#allocation5 + $0x50] sm:$0xff]
    %v139 = vld [vmem:[#allocation5 + $0x58] sm:$0xff]
    %v140 = vld [vmem:[#allocation5 + $0x60] sm:$0xff]
    %v141 = vld [vmem:[#allocation5 + $0x68] sm:$0xff]
    %v142 = vld [vmem:[#allocation5 + $0x70] sm:$0xff]
    %v143 = vld [vmem:[#allocation5 + $0x78] sm:$0xff]
    %v144 = vmax.f32 %v112, 0.0
    %v145 = vmax.f32 %v113, 0.0
    %v146 = vmax.f32 %v114, 0.0
    %v147 = vmax.f32 %v115, 0.0
    %v148 = vmax.f32 %v116, 0.0
    %v149 = vmax.f32 %v117, 0.0
    %v150 = vmax.f32 %v118, 0.0
    %v151 = vmax.f32 %v119, 0.0
    %v152 = vmax.f32 %v120, 0.0
    %v153 = vmax.f32 %v121, 0.0
    %v154 = vmax.f32 %v122, 0.0
    %v155 = vmax.f32 %v123, 0.0
    %v156 = vmax.f32 %v124, 0.0
    %v157 = vmax.f32 %v125, 0.0
    %v158 = vmax.f32 %v126, 0.0
    %v159 = vmax.f32 %v127, 0.0
    %v160 = vsub.f32 %v112, %v144
    %v161 = vsub.f32 %v113, %v145
    %v162 = vsub.f32 %v114, %v146
    %v163 = vsub.f32 %v115, %v147
    %v164 = vsub.f32 %v116, %v148
    %v165 = vsub.f32 %v117, %v149
    %v166 = vsub.f32 %v118, %v150
    %v167 = vsub.f32 %v119, %v151
    %v168 = vsub.f32 %v120, %v152
    %v169 = vsub.f32 %v121, %v153
    %v170 = vsub.f32 %v122, %v154
    %v171 = vsub.f32 %v123, %v155
    %v172 = vsub.f32 %v124, %v156
    %v173 = vsub.f32 %v125, %v157
    %v174 = vsub.f32 %v126, %v158
    %v175 = vsub.f32 %v127, %v159
    %v176 = vmax.f32 %v128, 0.0
    %v177 = vmax.f32 %v129, 0.0
    %v178 = vmax.f32 %v130, 0.0
    %v179 = vmax.f32 %v131, 0.0
    %v180 = vmax.f32 %v132, 0.0
    %v181 = vmax.f32 %v133, 0.0
    %v182 = vmax.f32 %v134, 0.0
    %v183 = vmax.f32 %v135, 0.0
    %v184 = vmax.f32 %v136, 0.0
    %v185 = vmax.f32 %v137, 0.0
    %v186 = vmax.f32 %v138, 0.0
    %v187 = vmax.f32 %v139, 0.0
    %v188 = vmax.f32 %v140, 0.0
    %v189 = vmax.f32 %v141, 0.0
    %v190 = vmax.f32 %v142, 0.0
    %v191 = vmax.f32 %v143, 0.0
    %v192 = vsub.f32 %v128, %v176
    %v193 = vsub.f32 %v129, %v177
    %v194 = vsub.f32 %v130, %v178
    %v195 = vsub.f32 %v131, %v179
    %v196 = vsub.f32 %v132, %v180
    %v197 = vsub.f32 %v133, %v181
    %v198 = vsub.f32 %v134, %v182
    %v199 = vsub.f32 %v135, %v183
    %v200 = vsub.f32 %v136, %v184
    %v201 = vsub.f32 %v137, %v185
    %v202 = vsub.f32 %v138, %v186
    %v203 = vsub.f32 %v139, %v187
    %v204 = vsub.f32 %v140, %v188
    %v205 = vsub.f32 %v141, %v189
    %v206 = vsub.f32 %v142, %v190
    %v207 = vsub.f32 %v143, %v191
    %v208 = vld [vmem:[#allocation7] sm:$0xff]
    %v209 = vld [vmem:[#allocation7 + $0x8] sm:$0xff]
    %v210 = vld [vmem:[#allocation7 + $0x10] sm:$0xff]
    %v211 = vld [vmem:[#allocation7 + $0x18] sm:$0xff]
    %v212 = vld [vmem:[#allocation7 + $0x20] sm:$0xff]
    %v213 = vld [vmem:[#allocation7 + $0x28] sm:$0xff]
    %v214 = vld [vmem:[#allocation7 + $0x30] sm:$0xff]
    %v215 = vld [vmem:[#allocation7 + $0x38] sm:$0xff]
    %v216 = vld [vmem:[#allocation7 + $0x40] sm:$0xff]
    %v217 = vld [vmem:[#allocation7 + $0x48] sm:$0xff]
    %v218 = vld [vmem:[#allocation7 + $0x50] sm:$0xff]
    %v219 = vld [vmem:[#allocation7 + $0x58] sm:$0xff]
    %v220 = vld [vmem:[#allocation7 + $0x60] sm:$0xff]
    %v221 = vld [vmem:[#allocation7 + $0x68] sm:$0xff]
    %v222 = vld [vmem:[#allocation7 + $0x70] sm:$0xff]
    %v223 = vld [vmem:[#allocation7 + $0x78] sm:$0xff]
    %v224 = vld [vmem:[#allocation8] sm:$0xff]
    %v225 = vld [vmem:[#allocation8 + $0x8] sm:$0xff]
    %v226 = vld [vmem:[#allocation8 + $0x10] sm:$0xff]
    %v227 = vld [vmem:[#allocation8 + $0x18] sm:$0xff]
    %v228 = vld [vmem:[#allocation8 + $0x20] sm:$0xff]
    %v229 = vld [vmem:[#allocation8 + $0x28] sm:$0xff]
    %v230 = vld [vmem:[#allocation8 + $0x30] sm:$0xff]
    %v231 = vld [vmem:[#allocation8 + $0x38] sm:$0xff]
    %v232 = vld [vmem:[#allocation8 + $0x40] sm:$0xff]
    %v233 = vld [vmem:[#allocation8 + $0x48] sm:$0xff]
    %v234 = vld [vmem:[#allocation8 + $0x50] sm:$0xff]
    %v235 = vld [vmem:[#allocation8 + $0x58] sm:$0xff]
    %v236 = vld [vmem:[#allocation8 + $0x60] sm:$0xff]
    %v237 = vld [vmem:[#allocation8 + $0x68] sm:$0xff]
    %v238 = vld [vmem:[#allocation8 + $0x70] sm:$0xff]
    %v239 = vld [vmem:[#allocation8 + $0x78] sm:$0xff]
    %v240 = vld [vmem:[#allocation10] sm:$0xff]
    %v241 = vld [vmem:[#allocation10 + $0x8] sm:$0xff]
    %v242 = vld [vmem:[#allocation10 + $0x10] sm:$0xff]
    %v243 = vld [vmem:[#allocation10 + $0x18] sm:$0xff]
    %v244 = vld [vmem:[#allocation10 + $0x20] sm:$0xff]
    %v245 = vld [vmem:[#allocation10 + $0x28] sm:$0xff]
    %v246 = vld [vmem:[#allocation10 + $0x30] sm:$0xff]
    %v247 = vld [vmem:[#allocation10 + $0x38] sm:$0xff]
    %v248 = vld [vmem:[#allocation10 + $0x40] sm:$0xff]
    %v249 = vld [vmem:[#allocation10 + $0x48] sm:$0xff]
    %v250 = vld [vmem:[#allocation10 + $0x50] sm:$0xff]
    %v251 = vld [vmem:[#allocation10 + $0x58] sm:$0xff]
    %v252 = vld [vmem:[#allocation10 + $0x60] sm:$0xff]
    %v253 = vld [vmem:[#allocation10 + $0x68] sm:$0xff]
    %v254 = vld [vmem:[#allocation10 + $0x70] sm:$0xff]
    %v255 = vld [vmem:[#allocation10 + $0x78] sm:$0xff]
    %256 = vmatprep.subr.mxu0 0.0
    %257 = vmatpush1.msra.mxu0 %v208
    %258 = vmatprep.subr.mxu0 0.0
    %259 = vmatpush1.msra.mxu0 %v209
    %260 = vmatprep.subr.mxu0 0.0
    %261 = vmatpush1.msra.mxu0 %v210
    %262 = vmatprep.subr.mxu0 0.0
    %263 = vmatpush1.msra.mxu0 %v211
    %264 = vmatprep.subr.mxu0 0.0
    %265 = vmatpush1.msra.mxu0 %v212
    %266 = vmatprep.subr.mxu0 0.0
    %267 = vmatpush1.msra.mxu0 %v213
    %268 = vmatprep.subr.mxu0 0.0
    %269 = vmatpush1.msra.mxu0 %v214
    %270 = vmatprep.subr.mxu0 0.0
    %271 = vmatpush1.msra.mxu0 %v215
    %272 = vmatprep.subr.mxu0 0.0
    %273 = vmatpush1.msra.mxu0 %v216
    %274 = vmatprep.subr.mxu0 0.0
    %275 = vmatpush1.msra.mxu0 %v217
    %276 = vmatprep.subr.mxu0 0.0
    %277 = vmatpush1.msra.mxu0 %v218
    %278 = vmatprep.subr.mxu0 0.0
    %279 = vmatpush1.msra.mxu0 %v219
    %280 = vmatprep.subr.mxu0 0.0
    %281 = vmatpush1.msra.mxu0 %v220
    %282 = vmatprep.subr.mxu0 0.0
    %283 = vmatpush1.msra.mxu0 %v221
    %284 = vmatprep.subr.mxu0 0.0
    %285 = vmatpush1.msra.mxu0 %v222
    %286 = vmatprep.subr.mxu0 0.0
    %287 = vmatpush1.msra.mxu0 %v223
    %288 = vmatprep.subr.mxu0 0.0
    %289 = vmatpush1.msra.mxu0 0.0
    %290 = vmatprep.subr.mxu0 0.0
    %291 = vmatpush1.msra.mxu0 0.0
    %292 = vmatprep.subr.mxu0 0.0
    %293 = vmatpush1.msra.mxu0 0.0
    %294 = vmatprep.subr.mxu0 0.0
    %295 = vmatpush1.msra.mxu0 0.0
    %296 = vmatprep.subr.mxu0 0.0
    %297 = vmatpush1.msra.mxu0 0.0
    %298 = vmatprep.subr.mxu0 0.0
    %299 = vmatpush1.msra.mxu0 0.0
    %300 = vmatprep.subr.mxu0 0.0
    %301 = vmatpush1.msra.mxu0 0.0
    %302 = vmatprep.subr.mxu0 0.0
    %303 = vmatpush1.msra.mxu0 0.0
    %304 = vmatprep.subr.mxu0 0.0
    %305 = vmatpush1.msra.mxu0 0.0
    %306 = vmatprep.subr.mxu0 0.0
    %307 = vmatpush1.msra.mxu0 0.0
    %308 = vmatprep.subr.mxu0 0.0
    %309 = vmatpush1.msra.mxu0 0.0
    %310 = vmatprep.subr.mxu0 0.0
    %311 = vmatpush1.msra.mxu0 0.0
    %312 = vmatprep.subr.mxu0 0.0
    %313 = vmatpush1.msra.mxu0 0.0
    %314 = vmatprep.subr.mxu0 0.0
    %315 = vmatpush1.msra.mxu0 0.0
    %316 = vmatprep.subr.mxu0 0.0
    %317 = vmatpush1.msra.mxu0 0.0
    %318 = vmatprep.subr.mxu0 0.0
    %319 = vmatpush1.msra.mxu0 0.0
    %320 = vmatprep.mubr.f32.mxu0 0.0
    %321 = vmatmul.mubr.f32.gmra.mrb[0].mxu0 %v144
    %v322 = vpop.f32.mrb[0].mxu0
    %v323 = vadd.f32 0.0, %v322
    %v324 = vpop.f32.mrb[0].mxu0
    %325 = vmatprep.mubr.f32.mxu0 0.0
    %326 = vmatmul.mubr.f32.gmra.mrb[0].mxu0 %v145
    %v327 = vpop.f32.mrb[0].mxu0
    %v328 = vadd.f32 0.0, %v327
    %v329 = vpop.f32.mrb[0].mxu0
    %330 = vmatprep.mubr.f32.mxu0 0.0
    %331 = vmatmul.mubr.f32.gmra.mrb[0].mxu0 %v146
    %v332 = vpop.f32.mrb[0].mxu0
    %v333 = vadd.f32 0.0, %v332
    %v334 = vpop.f32.mrb[0].mxu0
    %335 = vmatprep.mubr.f32.mxu0 0.0
    %336 = vmatmul.mubr.f32.gmra.mrb[0].mxu0 %v147
    %v337 = vpop.f32.mrb[0].mxu0
    %v338 = vadd.f32 0.0, %v337
    %v339 = vpop.f32.mrb[0].mxu0
    %340 = vmatprep.mubr.f32.mxu0 0.0
    %341 = vmatmul.mubr.f32.gmra.mrb[0].mxu0 %v148
    %v342 = vpop.f32.mrb[0].mxu0
    %v343 = vadd.f32 0.0, %v342
    %v344 = vpop.f32.mrb[0].mxu0
    %345 = vmatprep.mubr.f32.mxu0 0.0
    %346 = vmatmul.mubr.f32.gmra.mrb[0].mxu0 %v149
    %v347 = vpop.f32.mrb[0].mxu0
    %v348 = vadd.f32 0.0, %v347
    %v349 = vpop.f32.mrb[0].mxu0
    %350 = vmatprep.mubr.f32.mxu0 0.0
    %351 = vmatmul.mubr.f32.gmra.mrb[0].mxu0 %v150
    %v352 = vpop.f32.mrb[0].mxu0
    %v353 = vadd.f32 0.0, %v352
    %v354 = vpop.f32.mrb[0].mxu0
    %355 = vmatprep.mubr.f32.mxu0 0.0
    %356 = vmatmul.mubr.f32.gmra.mrb[0].mxu0 %v151
    %v357 = vpop.f32.mrb[0].mxu0
    %v358 = vadd.f32 0.0, %v357
    %v359 = vpop.f32.mrb[0].mxu0
    %360 = vmatprep.mubr.f32.mxu0 0.0
    %361 = vmatmul.mubr.f32.gmra.mrb[0].mxu0 %v152
    %v362 = vpop.f32.mrb[0].mxu0
    %v363 = vadd.f32 0.0, %v362
    %v364 = vpop.f32.mrb[0].mxu0
    %365 = vmatprep.mubr.f32.mxu0 0.0
    %366 = vmatmul.mubr.f32.gmra.mrb[0].mxu0 %v153
    %v367 = vpop.f32.mrb[0].mxu0
    %v368 = vadd.f32 0.0, %v367
    %v369 = vpop.f32.mrb[0].mxu0
    %370 = vmatprep.mubr.f32.mxu0 0.0
    %371 = vmatmul.mubr.f32.gmra.mrb[0].mxu0 %v154
    %v372 = vpop.f32.mrb[0].mxu0
    %v373 = vadd.f32 0.0, %v372
    %v374 = vpop.f32.mrb[0].mxu0
    %375 = vmatprep.mubr.f32.mxu0 0.0
    %376 = vmatmul.mubr.f32.gmra.mrb[0].mxu0 %v155
    %v377 = vpop.f32.mrb[0].mxu0
    %v378 = vadd.f32 0.0, %v377
    %v379 = vpop.f32.mrb[0].mxu0
    %380 = vmatprep.mubr.f32.mxu0 0.0
    %381 = vmatmul.mubr.f32.gmra.mrb[0].mxu0 %v156
    %v382 = vpop.f32.mrb[0].mxu0
    %v383 = vadd.f32 0.0, %v382
    %v384 = vpop.f32.mrb[0].mxu0
    %385 = vmatprep.mubr.f32.mxu0 0.0
    %386 = vmatmul.mubr.f32.gmra.mrb[0].mxu0 %v157
    %v387 = vpop.f32.mrb[0].mxu0
    %v388 = vadd.f32 0.0, %v387
    %v389 = vpop.f32.mrb[0].mxu0
    %390 = vmatprep.mubr.f32.mxu0 0.0
    %391 = vmatmul.mubr.f32.gmra.mrb[0].mxu0 %v158
    %v392 = vpop.f32.mrb[0].mxu0
    %v393 = vadd.f32 0.0, %v392
    %v394 = vpop.f32.mrb[0].mxu0
    %395 = vmatprep.mubr.f32.mxu0 0.0
    %396 = vmatmul.mubr.f32.gmra.mrb[0].mxu0 %v159
    %v397 = vpop.f32.mrb[0].mxu0
    %v398 = vadd.f32 0.0, %v397
    %v399 = vpop.f32.mrb[0].mxu0
    %400 = vdwg.mxu0
    %v401 = vadd.f32 %v240, %v323
    %v402 = vadd.f32 %v241, %v328
    %v403 = vadd.f32 %v242, %v333
    %v404 = vadd.f32 %v243, %v338
    %v405 = vadd.f32 %v244, %v343
    %v406 = vadd.f32 %v245, %v348
    %v407 = vadd.f32 %v246, %v353
    %v408 = vadd.f32 %v247, %v358
    %v409 = vadd.f32 %v248, %v363
    %v410 = vadd.f32 %v249, %v368
    %v411 = vadd.f32 %v250, %v373
    %v412 = vadd.f32 %v251, %v378
    %v413 = vadd.f32 %v252, %v383
    %v414 = vadd.f32 %v253, %v388
    %v415 = vadd.f32 %v254, %v393
    %v416 = vadd.f32 %v255, %v398
    %417 = vst [vmem:[#allocation10] sm:$0xff] %v401
    %418 = vst [vmem:[#allocation10 + $0x8] sm:$0xff] %v402
    %419 = vst [vmem:[#allocation10 + $0x10] sm:$0xff] %v403
    %420 = vst [vmem:[#allocation10 + $0x18] sm:$0xff] %v404
    %421 = vst [vmem:[#allocation10 + $0x20] sm:$0xff] %v405
    %422 = vst [vmem:[#allocation10 + $0x28] sm:$0xff] %v406
    %423 = vst [vmem:[#allocation10 + $0x30] sm:$0xff] %v407
    %424 = vst [vmem:[#allocation10 + $0x38] sm:$0xff] %v408
    %425 = vst [vmem:[#allocation10 + $0x40] sm:$0xff] %v409
    %426 = vst [vmem:[#allocation10 + $0x48] sm:$0xff] %v410
    %427 = vst [vmem:[#allocation10 + $0x50] sm:$0xff] %v411
    %428 = vst [vmem:[#allocation10 + $0x58] sm:$0xff] %v412
    %429 = vst [vmem:[#allocation10 + $0x60] sm:$0xff] %v413
    %430 = vst [vmem:[#allocation10 + $0x68] sm:$0xff] %v414
    %431 = vst [vmem:[#allocation10 + $0x70] sm:$0xff] %v415
    %432 = vst [vmem:[#allocation10 + $0x78] sm:$0xff] %v416
    %v433 = vld [vmem:[#allocation10] sm:$0xff]
    %v434 = vld [vmem:[#allocation10 + $0x8] sm:$0xff]
    %v435 = vld [vmem:[#allocation10 + $0x10] sm:$0xff]
    %v436 = vld [vmem:[#allocation10 + $0x18] sm:$0xff]
    %v437 = vld [vmem:[#allocation10 + $0x20] sm:$0xff]
    %v438 = vld [vmem:[#allocation10 + $0x28] sm:$0xff]
    %v439 = vld [vmem:[#allocation10 + $0x30] sm:$0xff]
    %v440 = vld [vmem:[#allocation10 + $0x38] sm:$0xff]
    %v441 = vld [vmem:[#allocation10 + $0x40] sm:$0xff]
    %v442 = vld [vmem:[#allocation10 + $0x48] sm:$0xff]
    %v443 = vld [vmem:[#allocation10 + $0x50] sm:$0xff]
    %v444 = vld [vmem:[#allocation10 + $0x58] sm:$0xff]
    %v445 = vld [vmem:[#allocation10 + $0x60] sm:$0xff]
    %v446 = vld [vmem:[#allocation10 + $0x68] sm:$0xff]
    %v447 = vld [vmem:[#allocation10 + $0x70] sm:$0xff]
    %v448 = vld [vmem:[#allocation10 + $0x78] sm:$0xff]
    %449 = vmatprep.subr.mxu0 0.0
    %450 = vmatpush1.msra.mxu0 %v224
    %451 = vmatprep.subr.mxu0 0.0
    %452 = vmatpush1.msra.mxu0 %v225
    %453 = vmatprep.subr.mxu0 0.0
    %454 = vmatpush1.msra.mxu0 %v226
    %455 = vmatprep.subr.mxu0 0.0
    %456 = vmatpush1.msra.mxu0 %v227
    %457 = vmatprep.subr.mxu0 0.0
    %458 = vmatpush1.msra.mxu0 %v228
    %459 = vmatprep.subr.mxu0 0.0
    %460 = vmatpush1.msra.mxu0 %v229
    %461 = vmatprep.subr.mxu0 0.0
    %462 = vmatpush1.msra.mxu0 %v230
    %463 = vmatprep.subr.mxu0 0.0
    %464 = vmatpush1.msra.mxu0 %v231
    %465 = vmatprep.subr.mxu0 0.0
    %466 = vmatpush1.msra.mxu0 %v232
    %467 = vmatprep.subr.mxu0 0.0
    %468 = vmatpush1.msra.mxu0 %v233
    %469 = vmatprep.subr.mxu0 0.0
    %470 = vmatpush1.msra.mxu0 %v234
    %471 = vmatprep.subr.mxu0 0.0
    %472 = vmatpush1.msra.mxu0 %v235
    %473 = vmatprep.subr.mxu0 0.0
    %474 = vmatpush1.msra.mxu0 %v236
    %475 = vmatprep.subr.mxu0 0.0
    %476 = vmatpush1.msra.mxu0 %v237
    %477 = vmatprep.subr.mxu0 0.0
    %478 = vmatpush1.msra.mxu0 %v238
    %479 = vmatprep.subr.mxu0 0.0
    %480 = vmatpush1.msra.mxu0 %v239
    %481 = vmatprep.subr.mxu0 0.0
    %482 = vmatpush1.msra.mxu0 0.0
    %483 = vmatprep.subr.mxu0 0.0
    %484 = vmatpush1.msra.mxu0 0.0
    %485 = vmatprep.subr.mxu0 0.0
    %486 = vmatpush1.msra.mxu0 0.0
    %487 = vmatprep.subr.mxu0 0.0
    %488 = vmatpush1.msra.mxu0 0.0
    %489 = vmatprep.subr.mxu0 0.0
    %490 = vmatpush1.msra.mxu0 0.0
    %491 = vmatprep.subr.mxu0 0.0
    %492 = vmatpush1.msra.mxu0 0.0
    %493 = vmatprep.subr.mxu0 0.0
    %494 = vmatpush1.msra.mxu0 0.0
    %495 = vmatprep.subr.mxu0 0.0
    %496 = vmatpush1.msra.mxu0 0.0
    %497 = vmatprep.subr.mxu0 0.0
    %498 = vmatpush1.msra.mxu0 0.0
    %499 = vmatprep.subr.mxu0 0.0
    %500 = vmatpush1.msra.mxu0 0.0
    %501 = vmatprep.subr.mxu0 0.0
    %502 = vmatpush1.msra.mxu0 0.0
    %503 = vmatprep.subr.mxu0 0.0
    %504 = vmatpush1.msra.mxu0 0.0
    %505 = vmatprep.subr.mxu0 0.0
    %506 = vmatpush1.msra.mxu0 0.0
    %507 = vmatprep.subr.mxu0 0.0
    %508 = vmatpush1.msra.mxu0 0.0
    %509 = vmatprep.subr.mxu0 0.0
    %510 = vmatpush1.msra.mxu0 0.0
    %511 = vmatprep.subr.mxu0 0.0
    %512 = vmatpush1.msra.mxu0 0.0
    %513 = vmatprep.mubr.f32.mxu0 0.0
    %514 = vmatmul.mubr.f32.gmra.mrb[0].mxu0 %v160
    %v515 = vpop.f32.mrb[0].mxu0
    %v516 = vadd.f32 0.0, %v515
    %v517 = vpop.f32.mrb[0].mxu0
    %518 = vmatprep.mubr.f32.mxu0 0.0
    %519 = vmatmul.mubr.f32.gmra.mrb[0].mxu0 %v161
    %v520 = vpop.f32.mrb[0].mxu0
    %v521 = vadd.f32 0.0, %v520
    %v522 = vpop.f32.mrb[0].mxu0
    %523 = vmatprep.mubr.f32.mxu0 0.0
    %524 = vmatmul.mubr.f32.gmra.mrb[0].mxu0 %v162
    %v525 = vpop.f32.mrb[0].mxu0
    %v526 = vadd.f32 0.0, %v525
    %v527 = vpop.f32.mrb[0].mxu0
    %528 = vmatprep.mubr.f32.mxu0 0.0
    %529 = vmatmul.mubr.f32.gmra.mrb[0].mxu0 %v163
    %v530 = vpop.f32.mrb[0].mxu0
    %v531 = vadd.f32 0.0, %v530
    %v532 = vpop.f32.mrb[0].mxu0
    %533 = vmatprep.mubr.f32.mxu0 0.0
    %534 = vmatmul.mubr.f32.gmra.mrb[0].mxu0 %v164
    %v535 = vpop.f32.mrb[0].mxu0
    %v536 = vadd.f32 0.0, %v535
    %v537 = vpop.f32.mrb[0].mxu0
    %538 = vmatprep.mubr.f32.mxu0 0.0
    %539 = vmatmul.mubr.f32.gmra.mrb[0].mxu0 %v165
    %v540 = vpop.f32.mrb[0].mxu0
    %v541 = vadd.f32 0.0, %v540
    %v542 = vpop.f32.mrb[0].mxu0
    %543 = vmatprep.mubr.f32.mxu0 0.0
    %544 = vmatmul.mubr.f32.gmra.mrb[0].mxu0 %v166
    %v545 = vpop.f32.mrb[0].mxu0
    %v546 = vadd.f32 0.0, %v545
    %v547 = vpop.f32.mrb[0].mxu0
    %548 = vmatprep.mubr.f32.mxu0 0.0
    %549 = vmatmul.mubr.f32.gmra.mrb[0].mxu0 %v167
    %v550 = vpop.f32.mrb[0].mxu0
    %v551 = vadd.f32 0.0, %v550
    %v552 = vpop.f32.mrb[0].mxu0
    %553 = vmatprep.mubr.f32.mxu0 0.0
    %554 = vmatmul.mubr.f32.gmra.mrb[0].mxu0 %v168
    %v555 = vpop.f32.mrb[0].mxu0
    %v556 = vadd.f32 0.0, %v555
    %v557 = vpop.f32.mrb[0].mxu0
    %558 = vmatprep.mubr.f32.mxu0 0.0
    %559 = vmatmul.mubr.f32.gmra.mrb[0].mxu0 %v169
    %v560 = vpop.f32.mrb[0].mxu0
    %v561 = vadd.f32 0.0, %v560
    %v562 = vpop.f32.mrb[0].mxu0
    %563 = vmatprep.mubr.f32.mxu0 0.0
    %564 = vmatmul.mubr.f32.gmra.mrb[0].mxu0 %v170
    %v565 = vpop.f32.mrb[0].mxu0
    %v566 = vadd.f32 0.0, %v565
    %v567 = vpop.f32.mrb[0].mxu0
    %568 = vmatprep.mubr.f32.mxu0 0.0
    %569 = vmatmul.mubr.f32.gmra.mrb[0].mxu0 %v171
    %v570 = vpop.f32.mrb[0].mxu0
    %v571 = vadd.f32 0.0, %v570
    %v572 = vpop.f32.mrb[0].mxu0
    %573 = vmatprep.mubr.f32.mxu0 0.0
    %574 = vmatmul.mubr.f32.gmra.mrb[0].mxu0 %v172
    %v575 = vpop.f32.mrb[0].mxu0
    %v576 = vadd.f32 0.0, %v575
    %v577 = vpop.f32.mrb[0].mxu0
    %578 = vmatprep.mubr.f32.mxu0 0.0
    %579 = vmatmul.mubr.f32.gmra.mrb[0].mxu0 %v173
    %v580 = vpop.f32.mrb[0].mxu0
    %v581 = vadd.f32 0.0, %v580
    %v582 = vpop.f32.mrb[0].mxu0
    %583 = vmatprep.mubr.f32.mxu0 0.0
    %584 = vmatmul.mubr.f32.gmra.mrb[0].mxu0 %v174
    %v585 = vpop.f32.mrb[0].mxu0
    %v586 = vadd.f32 0.0, %v585
    %v587 = vpop.f32.mrb[0].mxu0
    %588 = vmatprep.mubr.f32.mxu0 0.0
    %589 = vmatmul.mubr.f32.gmra.mrb[0].mxu0 %v175
    %v590 = vpop.f32.mrb[0].mxu0
    %v591 = vadd.f32 0.0, %v590
    %v592 = vpop.f32.mrb[0].mxu0
    %593 = vdwg.mxu0
    %v594 = vadd.f32 %v433, %v516
    %v595 = vadd.f32 %v434, %v521
    %v596 = vadd.f32 %v435, %v526
    %v597 = vadd.f32 %v436, %v531
    %v598 = vadd.f32 %v437, %v536
    %v599 = vadd.f32 %v438, %v541
    %v600 = vadd.f32 %v439, %v546
    %v601 = vadd.f32 %v440, %v551
    %v602 = vadd.f32 %v441, %v556
    %v603 = vadd.f32 %v442, %v561
    %v604 = vadd.f32 %v443, %v566
    %v605 = vadd.f32 %v444, %v571
    %v606 = vadd.f32 %v445, %v576
    %v607 = vadd.f32 %v446, %v581
    %v608 = vadd.f32 %v447, %v586
    %v609 = vadd.f32 %v448, %v591
    %610 = vst [vmem:[#allocation10] sm:$0xff] %v594
    %611 = vst [vmem:[#allocation10 + $0x8] sm:$0xff] %v595
    %612 = vst [vmem:[#allocation10 + $0x10] sm:$0xff] %v596
    %613 = vst [vmem:[#allocation10 + $0x18] sm:$0xff] %v597
    %614 = vst [vmem:[#allocation10 + $0x20] sm:$0xff] %v598
    %615 = vst [vmem:[#allocation10 + $0x28] sm:$0xff] %v599
    %616 = vst [vmem:[#allocation10 + $0x30] sm:$0xff] %v600
    %617 = vst [vmem:[#allocation10 + $0x38] sm:$0xff] %v601
    %618 = vst [vmem:[#allocation10 + $0x40] sm:$0xff] %v602
    %619 = vst [vmem:[#allocation10 + $0x48] sm:$0xff] %v603
    %620 = vst [vmem:[#allocation10 + $0x50] sm:$0xff] %v604
    %621 = vst [vmem:[#allocation10 + $0x58] sm:$0xff] %v605
    %622 = vst [vmem:[#allocation10 + $0x60] sm:$0xff] %v606
    %623 = vst [vmem:[#allocation10 + $0x68] sm:$0xff] %v607
    %624 = vst [vmem:[#allocation10 + $0x70] sm:$0xff] %v608
    %625 = vst [vmem:[#allocation10 + $0x78] sm:$0xff] %v609
    %v626 = vld [vmem:[#allocation11] sm:$0xff]
    %v627 = vld [vmem:[#allocation11 + $0x8] sm:$0xff]
    %v628 = vld [vmem:[#allocation11 + $0x10] sm:$0xff]
    %v629 = vld [vmem:[#allocation11 + $0x18] sm:$0xff]
    %v630 = vld [vmem:[#allocation11 + $0x20] sm:$0xff]
    %v631 = vld [vmem:[#allocation11 + $0x28] sm:$0xff]
    %v632 = vld [vmem:[#allocation11 + $0x30] sm:$0xff]
    %v633 = vld [vmem:[#allocation11 + $0x38] sm:$0xff]
    %v634 = vld [vmem:[#allocation11 + $0x40] sm:$0xff]
    %v635 = vld [vmem:[#allocation11 + $0x48] sm:$0xff]
    %v636 = vld [vmem:[#allocation11 + $0x50] sm:$0xff]
    %v637 = vld [vmem:[#allocation11 + $0x58] sm:$0xff]
    %v638 = vld [vmem:[#allocation11 + $0x60] sm:$0xff]
    %v639 = vld [vmem:[#allocation11 + $0x68] sm:$0xff]
    %v640 = vld [vmem:[#allocation11 + $0x70] sm:$0xff]
    %v641 = vld [vmem:[#allocation11 + $0x78] sm:$0xff]
    %642 = vmatprep.subr.mxu0 0.0
    %643 = vmatpush1.msra.mxu0 %v224
    %644 = vmatprep.subr.mxu0 0.0
    %645 = vmatpush1.msra.mxu0 %v225
    %646 = vmatprep.subr.mxu0 0.0
    %647 = vmatpush1.msra.mxu0 %v226
    %648 = vmatprep.subr.mxu0 0.0
    %649 = vmatpush1.msra.mxu0 %v227
    %650 = vmatprep.subr.mxu0 0.0
    %651 = vmatpush1.msra.mxu0 %v228
    %652 = vmatprep.subr.mxu0 0.0
    %653 = vmatpush1.msra.mxu0 %v229
    %654 = vmatprep.subr.mxu0 0.0
    %655 = vmatpush1.msra.mxu0 %v230
    %656 = vmatprep.subr.mxu0 0.0
    %657 = vmatpush1.msra.mxu0 %v231
    %658 = vmatprep.subr.mxu0 0.0
    %659 = vmatpush1.msra.mxu0 %v232
    %660 = vmatprep.subr.mxu0 0.0
    %661 = vmatpush1.msra.mxu0 %v233
    %662 = vmatprep.subr.mxu0 0.0
    %663 = vmatpush1.msra.mxu0 %v234
    %664 = vmatprep.subr.mxu0 0.0
    %665 = vmatpush1.msra.mxu0 %v235
    %666 = vmatprep.subr.mxu0 0.0
    %667 = vmatpush1.msra.mxu0 %v236
    %668 = vmatprep.subr.mxu0 0.0
    %669 = vmatpush1.msra.mxu0 %v237
    %670 = vmatprep.subr.mxu0 0.0
    %671 = vmatpush1.msra.mxu0 %v238
    %672 = vmatprep.subr.mxu0 0.0
    %673 = vmatpush1.msra.mxu0 %v239
    %674 = vmatprep.subr.mxu0 0.0
    %675 = vmatpush1.msra.mxu0 0.0
    %676 = vmatprep.subr.mxu0 0.0
    %677 = vmatpush1.msra.mxu0 0.0
    %678 = vmatprep.subr.mxu0 0.0
    %679 = vmatpush1.msra.mxu0 0.0
    %680 = vmatprep.subr.mxu0 0.0
    %681 = vmatpush1.msra.mxu0 0.0
    %682 = vmatprep.subr.mxu0 0.0
    %683 = vmatpush1.msra.mxu0 0.0
    %684 = vmatprep.subr.mxu0 0.0
    %685 = vmatpush1.msra.mxu0 0.0
    %686 = vmatprep.subr.mxu0 0.0
    %687 = vmatpush1.msra.mxu0 0.0
    %688 = vmatprep.subr.mxu0 0.0
    %689 = vmatpush1.msra.mxu0 0.0
    %690 = vmatprep.subr.mxu0 0.0
    %691 = vmatpush1.msra.mxu0 0.0
    %692 = vmatprep.subr.mxu0 0.0
    %693 = vmatpush1.msra.mxu0 0.0
    %694 = vmatprep.subr.mxu0 0.0
    %695 = vmatpush1.msra.mxu0 0.0
    %696 = vmatprep.subr.mxu0 0.0
    %697 = vmatpush1.msra.mxu0 0.0
    %698 = vmatprep.subr.mxu0 0.0
    %699 = vmatpush1.msra.mxu0 0.0
    %700 = vmatprep.subr.mxu0 0.0
    %701 = vmatpush1.msra.mxu0 0.0
    %702 = vmatprep.subr.mxu0 0.0
    %703 = vmatpush1.msra.mxu0 0.0
    %704 = vmatprep.subr.mxu0 0.0
    %705 = vmatpush1.msra.mxu0 0.0
    %706 = vmatprep.mubr.f32.mxu0 0.0
    %707 = vmatmul.mubr.f32.gmra.mrb[0].mxu0 %v176
    %v708 = vpop.f32.mrb[0].mxu0
    %v709 = vadd.f32 0.0, %v708
    %v710 = vpop.f32.mrb[0].mxu0
    %711 = vmatprep.mubr.f32.mxu0 0.0
    %712 = vmatmul.mubr.f32.gmra.mrb[0].mxu0 %v177
    %v713 = vpop.f32.mrb[0].mxu0
    %v714 = vadd.f32 0.0, %v713
    %v715 = vpop.f32.mrb[0].mxu0
    %716 = vmatprep.mubr.f32.mxu0 0.0
    %717 = vmatmul.mubr.f32.gmra.mrb[0].mxu0 %v178
    %v718 = vpop.f32.mrb[0].mxu0
    %v719 = vadd.f32 0.0, %v718
    %v720 = vpop.f32.mrb[0].mxu0
    %721 = vmatprep.mubr.f32.mxu0 0.0
    %722 = vmatmul.mubr.f32.gmra.mrb[0].mxu0 %v179
    %v723 = vpop.f32.mrb[0].mxu0
    %v724 = vadd.f32 0.0, %v723
    %v725 = vpop.f32.mrb[0].mxu0
    %726 = vmatprep.mubr.f32.mxu0 0.0
    %727 = vmatmul.mubr.f32.gmra.mrb[0].mxu0 %v180
    %v728 = vpop.f32.mrb[0].mxu0
    %v729 = vadd.f32 0.0, %v728
    %v730 = vpop.f32.mrb[0].mxu0
    %731 = vmatprep.mubr.f32.mxu0 0.0
    %732 = vmatmul.mubr.f32.gmra.mrb[0].mxu0 %v181
    %v733 = vpop.f32.mrb[0].mxu0
    %v734 = vadd.f32 0.0, %v733
    %v735 = vpop.f32.mrb[0].mxu0
    %736 = vmatprep.mubr.f32.mxu0 0.0
    %737 = vmatmul.mubr.f32.gmra.mrb[0].mxu0 %v182
    %v738 = vpop.f32.mrb[0].mxu0
    %v739 = vadd.f32 0.0, %v738
    %v740 = vpop.f32.mrb[0].mxu0
    %741 = vmatprep.mubr.f32.mxu0 0.0
    %742 = vmatmul.mubr.f32.gmra.mrb[0].mxu0 %v183
    %v743 = vpop.f32.mrb[0].mxu0
    %v744 = vadd.f32 0.0, %v743
    %v745 = vpop.f32.mrb[0].mxu0
    %746 = vmatprep.mubr.f32.mxu0 0.0
    %747 = vmatmul.mubr.f32.gmra.mrb[0].mxu0 %v184
    %v748 = vpop.f32.mrb[0].mxu0
    %v749 = vadd.f32 0.0, %v748
    %v750 = vpop.f32.mrb[0].mxu0
    %751 = vmatprep.mubr.f32.mxu0 0.0
    %752 = vmatmul.mubr.f32.gmra.mrb[0].mxu0 %v185
    %v753 = vpop.f32.mrb[0].mxu0
    %v754 = vadd.f32 0.0, %v753
    %v755 = vpop.f32.mrb[0].mxu0
    %756 = vmatprep.mubr.f32.mxu0 0.0
    %757 = vmatmul.mubr.f32.gmra.mrb[0].mxu0 %v186
    %v758 = vpop.f32.mrb[0].mxu0
    %v759 = vadd.f32 0.0, %v758
    %v760 = vpop.f32.mrb[0].mxu0
    %761 = vmatprep.mubr.f32.mxu0 0.0
    %762 = vmatmul.mubr.f32.gmra.mrb[0].mxu0 %v187
    %v763 = vpop.f32.mrb[0].mxu0
    %v764 = vadd.f32 0.0, %v763
    %v765 = vpop.f32.mrb[0].mxu0
    %766 = vmatprep.mubr.f32.mxu0 0.0
    %767 = vmatmul.mubr.f32.gmra.mrb[0].mxu0 %v188
    %v768 = vpop.f32.mrb[0].mxu0
    %v769 = vadd.f32 0.0, %v768
    %v770 = vpop.f32.mrb[0].mxu0
    %771 = vmatprep.mubr.f32.mxu0 0.0
    %772 = vmatmul.mubr.f32.gmra.mrb[0].mxu0 %v189
    %v773 = vpop.f32.mrb[0].mxu0
    %v774 = vadd.f32 0.0, %v773
    %v775 = vpop.f32.mrb[0].mxu0
    %776 = vmatprep.mubr.f32.mxu0 0.0
    %777 = vmatmul.mubr.f32.gmra.mrb[0].mxu0 %v190
    %v778 = vpop.f32.mrb[0].mxu0
    %v779 = vadd.f32 0.0, %v778
    %v780 = vpop.f32.mrb[0].mxu0
    %781 = vmatprep.mubr.f32.mxu0 0.0
    %782 = vmatmul.mubr.f32.gmra.mrb[0].mxu0 %v191
    %v783 = vpop.f32.mrb[0].mxu0
    %v784 = vadd.f32 0.0, %v783
    %v785 = vpop.f32.mrb[0].mxu0
    %786 = vdwg.mxu0
    %v787 = vadd.f32 %v626, %v709
    %v788 = vadd.f32 %v627, %v714
    %v789 = vadd.f32 %v628, %v719
    %v790 = vadd.f32 %v629, %v724
    %v791 = vadd.f32 %v630, %v729
    %v792 = vadd.f32 %v631, %v734
    %v793 = vadd.f32 %v632, %v739
    %v794 = vadd.f32 %v633, %v744
    %v795 = vadd.f32 %v634, %v749
    %v796 = vadd.f32 %v635, %v754
    %v797 = vadd.f32 %v636, %v759
    %v798 = vadd.f32 %v637, %v764
    %v799 = vadd.f32 %v638, %v769
    %v800 = vadd.f32 %v639, %v774
    %v801 = vadd.f32 %v640, %v779
    %v802 = vadd.f32 %v641, %v784
    %803 = vst [vmem:[#allocation11] sm:$0xff] %v787
    %804 = vst [vmem:[#allocation11 + $0x8] sm:$0xff] %v788
    %805 = vst [vmem:[#allocation11 + $0x10] sm:$0xff] %v789
    %806 = vst [vmem:[#allocation11 + $0x18] sm:$0xff] %v790
    %807 = vst [vmem:[#allocation11 + $0x20] sm:$0xff] %v791
    %808 = vst [vmem:[#allocation11 + $0x28] sm:$0xff] %v792
    %809 = vst [vmem:[#allocation11 + $0x30] sm:$0xff] %v793
    %810 = vst [vmem:[#allocation11 + $0x38] sm:$0xff] %v794
    %811 = vst [vmem:[#allocation11 + $0x40] sm:$0xff] %v795
    %812 = vst [vmem:[#allocation11 + $0x48] sm:$0xff] %v796
    %813 = vst [vmem:[#allocation11 + $0x50] sm:$0xff] %v797
    %814 = vst [vmem:[#allocation11 + $0x58] sm:$0xff] %v798
    %815 = vst [vmem:[#allocation11 + $0x60] sm:$0xff] %v799
    %816 = vst [vmem:[#allocation11 + $0x68] sm:$0xff] %v800
    %817 = vst [vmem:[#allocation11 + $0x70] sm:$0xff] %v801
    %818 = vst [vmem:[#allocation11 + $0x78] sm:$0xff] %v802
    %v819 = vld [vmem:[#allocation11] sm:$0xff]
    %v820 = vld [vmem:[#allocation11 + $0x8] sm:$0xff]
    %v821 = vld [vmem:[#allocation11 + $0x10] sm:$0xff]
    %v822 = vld [vmem:[#allocation11 + $0x18] sm:$0xff]
    %v823 = vld [vmem:[#allocation11 + $0x20] sm:$0xff]
    %v824 = vld [vmem:[#allocation11 + $0x28] sm:$0xff]
    %v825 = vld [vmem:[#allocation11 + $0x30] sm:$0xff]
    %v826 = vld [vmem:[#allocation11 + $0x38] sm:$0xff]
    %v827 = vld [vmem:[#allocation11 + $0x40] sm:$0xff]
    %v828 = vld [vmem:[#allocation11 + $0x48] sm:$0xff]
    %v829 = vld [vmem:[#allocation11 + $0x50] sm:$0xff]
    %v830 = vld [vmem:[#allocation11 + $0x58] sm:$0xff]
    %v831 = vld [vmem:[#allocation11 + $0x60] sm:$0xff]
    %v832 = vld [vmem:[#allocation11 + $0x68] sm:$0xff]
    %v833 = vld [vmem:[#allocation11 + $0x70] sm:$0xff]
    %v834 = vld [vmem:[#allocation11 + $0x78] sm:$0xff]
    %835 = vmatprep.subr.mxu0 0.0
    %836 = vmatpush1.msra.mxu0 %v208
    %837 = vmatprep.subr.mxu0 0.0
    %838 = vmatpush1.msra.mxu0 %v209
    %839 = vmatprep.subr.mxu0 0.0
    %840 = vmatpush1.msra.mxu0 %v210
    %841 = vmatprep.subr.mxu0 0.0
    %842 = vmatpush1.msra.mxu0 %v211
    %843 = vmatprep.subr.mxu0 0.0
    %844 = vmatpush1.msra.mxu0 %v212
    %845 = vmatprep.subr.mxu0 0.0
    %846 = vmatpush1.msra.mxu0 %v213
    %847 = vmatprep.subr.mxu0 0.0
    %848 = vmatpush1.msra.mxu0 %v214
    %849 = vmatprep.subr.mxu0 0.0
    %850 = vmatpush1.msra.mxu0 %v215
    %851 = vmatprep.subr.mxu0 0.0
    %852 = vmatpush1.msra.mxu0 %v216
    %853 = vmatprep.subr.mxu0 0.0
    %854 = vmatpush1.msra.mxu0 %v217
    %855 = vmatprep.subr.mxu0 0.0
    %856 = vmatpush1.msra.mxu0 %v218
    %857 = vmatprep.subr.mxu0 0.0
    %858 = vmatpush1.msra.mxu0 %v219
    %859 = vmatprep.subr.mxu0 0.0
    %860 = vmatpush1.msra.mxu0 %v220
    %861 = vmatprep.subr.mxu0 0.0
    %862 = vmatpush1.msra.mxu0 %v221
    %863 = vmatprep.subr.mxu0 0.0
    %864 = vmatpush1.msra.mxu0 %v222
    %865 = vmatprep.subr.mxu0 0.0
    %866 = vmatpush1.msra.mxu0 %v223
    %867 = vmatprep.subr.mxu0 0.0
    %868 = vmatpush1.msra.mxu0 0.0
    %869 = vmatprep.subr.mxu0 0.0
    %870 = vmatpush1.msra.mxu0 0.0
    %871 = vmatprep.subr.mxu0 0.0
    %872 = vmatpush1.msra.mxu0 0.0
    %873 = vmatprep.subr.mxu0 0.0
    %874 = vmatpush1.msra.mxu0 0.0
    %875 = vmatprep.subr.mxu0 0.0
    %876 = vmatpush1.msra.mxu0 0.0
    %877 = vmatprep.subr.mxu0 0.0
    %878 = vmatpush1.msra.mxu0 0.0
    %879 = vmatprep.subr.mxu0 0.0
    %880 = vmatpush1.msra.mxu0 0.0
    %881 = vmatprep.subr.mxu0 0.0
    %882 = vmatpush1.msra.mxu0 0.0
    %883 = vmatprep.subr.mxu0 0.0
    %884 = vmatpush1.msra.mxu0 0.0
    %885 = vmatprep.subr.mxu0 0.0
    %886 = vmatpush1.msra.mxu0 0.0
    %887 = vmatprep.subr.mxu0 0.0
    %888 = vmatpush1.msra.mxu0 0.0
    %889 = vmatprep.subr.mxu0 0.0
    %890 = vmatpush1.msra.mxu0 0.0
    %891 = vmatprep.subr.mxu0 0.0
    %892 = vmatpush1.msra.mxu0 0.0
    %893 = vmatprep.subr.mxu0 0.0
    %894 = vmatpush1.msra.mxu0 0.0
    %895 = vmatprep.subr.mxu0 0.0
    %896 = vmatpush1.msra.mxu0 0.0
    %897 = vmatprep.subr.mxu0 0.0
    %898 = vmatpush1.msra.mxu0 0.0
    %899 = vmatprep.mubr.f32.mxu0 0.0
    %900 = vmatmul.mubr.f32.gmra.mrb[0].mxu0 %v192
    %v901 = vpop.f32.mrb[0].mxu0
    %v902 = vadd.f32 0.0, %v901
    %v903 = vpop.f32.mrb[0].mxu0
    %904 = vmatprep.mubr.f32.mxu0 0.0
    %905 = vmatmul.mubr.f32.gmra.mrb[0].mxu0 %v193
    %v906 = vpop.f32.mrb[0].mxu0
    %v907 = vadd.f32 0.0, %v906
    %v908 = vpop.f32.mrb[0].mxu0
    %909 = vmatprep.mubr.f32.mxu0 0.0
    %910 = vmatmul.mubr.f32.gmra.mrb[0].mxu0 %v194
    %v911 = vpop.f32.mrb[0].mxu0
    %v912 = vadd.f32 0.0, %v911
    %v913 = vpop.f32.mrb[0].mxu0
    %914 = vmatprep.mubr.f32.mxu0 0.0
    %915 = vmatmul.mubr.f32.gmra.mrb[0].mxu0 %v195
    %v916 = vpop.f32.mrb[0].mxu0
    %v917 = vadd.f32 0.0, %v916
    %v918 = vpop.f32.mrb[0].mxu0
    %919 = vmatprep.mubr.f32.mxu0 0.0
    %920 = vmatmul.mubr.f32.gmra.mrb[0].mxu0 %v196
    %v921 = vpop.f32.mrb[0].mxu0
    %v922 = vadd.f32 0.0, %v921
    %v923 = vpop.f32.mrb[0].mxu0
    %924 = vmatprep.mubr.f32.mxu0 0.0
    %925 = vmatmul.mubr.f32.gmra.mrb[0].mxu0 %v197
    %v926 = vpop.f32.mrb[0].mxu0
    %v927 = vadd.f32 0.0, %v926
    %v928 = vpop.f32.mrb[0].mxu0
    %929 = vmatprep.mubr.f32.mxu0 0.0
    %930 = vmatmul.mubr.f32.gmra.mrb[0].mxu0 %v198
    %v931 = vpop.f32.mrb[0].mxu0
    %v932 = vadd.f32 0.0, %v931
    %v933 = vpop.f32.mrb[0].mxu0
    %934 = vmatprep.mubr.f32.mxu0 0.0
    %935 = vmatmul.mubr.f32.gmra.mrb[0].mxu0 %v199
    %v936 = vpop.f32.mrb[0].mxu0
    %v937 = vadd.f32 0.0, %v936
    %v938 = vpop.f32.mrb[0].mxu0
    %939 = vmatprep.mubr.f32.mxu0 0.0
    %940 = vmatmul.mubr.f32.gmra.mrb[0].mxu0 %v200
    %v941 = vpop.f32.mrb[0].mxu0
    %v942 = vadd.f32 0.0, %v941
    %v943 = vpop.f32.mrb[0].mxu0
    %944 = vmatprep.mubr.f32.mxu0 0.0
    %945 = vmatmul.mubr.f32.gmra.mrb[0].mxu0 %v201
    %v946 = vpop.f32.mrb[0].mxu0
    %v947 = vadd.f32 0.0, %v946
    %v948 = vpop.f32.mrb[0].mxu0
    %949 = vmatprep.mubr.f32.mxu0 0.0
    %950 = vmatmul.mubr.f32.gmra.mrb[0].mxu0 %v202
    %v951 = vpop.f32.mrb[0].mxu0
    %v952 = vadd.f32 0.0, %v951
    %v953 = vpop.f32.mrb[0].mxu0
    %954 = vmatprep.mubr.f32.mxu0 0.0
    %955 = vmatmul.mubr.f32.gmra.mrb[0].mxu0 %v203
    %v956 = vpop.f32.mrb[0].mxu0
    %v957 = vadd.f32 0.0, %v956
    %v958 = vpop.f32.mrb[0].mxu0
    %959 = vmatprep.mubr.f32.mxu0 0.0
    %960 = vmatmul.mubr.f32.gmra.mrb[0].mxu0 %v204
    %v961 = vpop.f32.mrb[0].mxu0
    %v962 = vadd.f32 0.0, %v961
    %v963 = vpop.f32.mrb[0].mxu0
    %964 = vmatprep.mubr.f32.mxu0 0.0
    %965 = vmatmul.mubr.f32.gmra.mrb[0].mxu0 %v205
    %v966 = vpop.f32.mrb[0].mxu0
    %v967 = vadd.f32 0.0, %v966
    %v968 = vpop.f32.mrb[0].mxu0
    %969 = vmatprep.mubr.f32.mxu0 0.0
    %970 = vmatmul.mubr.f32.gmra.mrb[0].mxu0 %v206
    %v971 = vpop.f32.mrb[0].mxu0
    %v972 = vadd.f32 0.0, %v971
    %v973 = vpop.f32.mrb[0].mxu0
    %974 = vmatprep.mubr.f32.mxu0 0.0
    %975 = vmatmul.mubr.f32.gmra.mrb[0].mxu0 %v207
    %v976 = vpop.f32.mrb[0].mxu0
    %v977 = vadd.f32 0.0, %v976
    %v978 = vpop.f32.mrb[0].mxu0
    %979 = vdwg.mxu0
    %v980 = vadd.f32 %v819, %v902
    %v981 = vadd.f32 %v820, %v907
    %v982 = vadd.f32 %v821, %v912
    %v983 = vadd.f32 %v822, %v917
    %v984 = vadd.f32 %v823, %v922
    %v985 = vadd.f32 %v824, %v927
    %v986 = vadd.f32 %v825, %v932
    %v987 = vadd.f32 %v826, %v937
    %v988 = vadd.f32 %v827, %v942
    %v989 = vadd.f32 %v828, %v947
    %v990 = vadd.f32 %v829, %v952
    %v991 = vadd.f32 %v830, %v957
    %v992 = vadd.f32 %v831, %v962
    %v993 = vadd.f32 %v832, %v967
    %v994 = vadd.f32 %v833, %v972
    %v995 = vadd.f32 %v834, %v977
    %996 = vst [vmem:[#allocation11] sm:$0xff] %v980
    %997 = vst [vmem:[#allocation11 + $0x8] sm:$0xff] %v981
    %998 = vst [vmem:[#allocation11 + $0x10] sm:$0xff] %v982
    %999 = vst [vmem:[#allocation11 + $0x18] sm:$0xff] %v983
    %1000 = vst [vmem:[#allocation11 + $0x20] sm:$0xff] %v984
    %1001 = vst [vmem:[#allocation11 + $0x28] sm:$0xff] %v985
    %1002 = vst [vmem:[#allocation11 + $0x30] sm:$0xff] %v986
    %1003 = vst [vmem:[#allocation11 + $0x38] sm:$0xff] %v987
    %1004 = vst [vmem:[#allocation11 + $0x40] sm:$0xff] %v988
    %1005 = vst [vmem:[#allocation11 + $0x48] sm:$0xff] %v989
    %1006 = vst [vmem:[#allocation11 + $0x50] sm:$0xff] %v990
    %1007 = vst [vmem:[#allocation11 + $0x58] sm:$0xff] %v991
    %1008 = vst [vmem:[#allocation11 + $0x60] sm:$0xff] %v992
    %1009 = vst [vmem:[#allocation11 + $0x68] sm:$0xff] %v993
    %1010 = vst [vmem:[#allocation11 + $0x70] sm:$0xff] %v994
    %1011 = vst [vmem:[#allocation11 + $0x78] sm:$0xff] %v995
    // Predicated region
    $region38: #{tpu_custom_call.1} parent=1 // pred_check
      _
    $region39: #{tpu_custom_call.1} parent=1 // pred_check_branch
      %1013 = sbr.rel (0) target = $region41
    $region40: #{tpu_custom_call.1} parent=1 // pred_region
      %s1015 = ssub.s32 2048, 2048
      %1016 = vsyncadd [#allocation4], %s1015
      %s1017 = sshll.u32 [#allocation10], 4
      %s1018 = int_to_ptr.vmem [resolvable:$true] %s1017
      %1023 = dma.vmem_to_hbm [thread:$0]  %s1018, 2048, %s4, [#allocation4], 128, 128, 8
    $region41: #{tpu_custom_call.1} parent=1 // pred_fallthru
      _
    // Predicated region
    $region42: #{tpu_custom_call.1} parent=1 // pred_check
      _
    $region43: #{tpu_custom_call.1} parent=1 // pred_check_branch
      %1025 = sbr.rel (0) target = $region45
    $region44: #{tpu_custom_call.1} parent=1 // pred_region
      %s1027 = ssub.s32 2048, 2048
      %1028 = vsyncadd [#allocation12], %s1027
      %s1029 = sshll.u32 [#allocation11], 4
      %s1030 = int_to_ptr.vmem [resolvable:$true] %s1029
      %1035 = dma.vmem_to_hbm [thread:$0]  %s1030, 2048, %s5, [#allocation12], 128, 128, 8
    $region45: #{tpu_custom_call.1} parent=1 // pred_fallthru
      _
    // Predicated region
    $region46: #{tpu_custom_call.1} parent=1 // pred_check
      _
    $region47: #{tpu_custom_call.1} parent=1 // pred_check_branch
      %1037 = sbr.rel (0) target = $region49
    $region48: #{tpu_custom_call.1} parent=1 // pred_region
      %1038 = dma.done [#allocation4], 2048
    $region49: #{tpu_custom_call.1} parent=1 // pred_fallthru
      _
    // Predicated region
    $region50: #{tpu_custom_call.1} parent=1 // pred_check
      _
    $region51: #{tpu_custom_call.1} parent=1 // pred_check_branch
      %1040 = sbr.rel (0) target = $region53
    $region52: #{tpu_custom_call.1} parent=1 // pred_region
      %1041 = dma.done [#allocation12], 2048
    $region53: #{tpu_custom_call.1} parent=1 // pred_fallthru
      _
    %1042 = vsyncpa [#allocation3], 1
    %1043 = vsyncpa [#allocation6], 1
    %1044 = vsyncpa [#allocation9], 1
    %1045 = vsyncpa [#allocation4], 1
    %1046 = vsyncpa [#allocation12], 1

</llo_original>
